<compile_context>
chip_gen: v7x
topology: tpu7x:2x2x1
jax: 0.10.0
libtpu: 0.0.40
codegen_flags: <defaults>
</compile_context>

<pallas_src>
import functools
import math

import jax
import jax.numpy as jnp
import numpy as np
from jax.experimental import pallas as pl
from jax.experimental.pallas import tpu as pltpu

_EPS = 1e-5  # PyTorch GroupNorm default eps


def _gelu_exact(v):
    # nn.GELU() default (erf form) -- used by the pure-JAX reference only.
    return 0.5 * v * (1.0 + jax.lax.erf(v * (1.0 / math.sqrt(2.0))))


def _double_conv_kernel(x_ref, w1_ref, w2_ref, g_ref, b_ref, m_ref, o_ref,
                        h_ref, tap_ref, *, H, W, front, Np_pad, bt,
                        cin, cmid, cout, residual):
    Wp = W + 2

    mask = m_ref[...]      # (1, Np_pad) f32: 1.0 at interior pixels, 0.0 else
    gamma = g_ref[...]     # (cout, 1)
    beta = b_ref[...]      # (cout, 1)

    # Zero only the two `front`-wide slack bands of the intermediate scratch,
    # once per grid step (tiny).  The [front, front+Np_pad) window is fully
    # rewritten (masked) for every sample below.  Done unconditionally -- not
    # under program_id == 0 -- so it stays correct if the parallel batch axis
    # is split across TensorCores.
    zband = jnp.zeros((cmid, front), jnp.bfloat16)
    h_ref[:, 0:front] = zband
    h_ref[:, front + Np_pad:] = zband

    offs = [(dh - 1) * Wp + (dw - 1) for dh in range(3) for dw in range(3)]

    def group_norm(v, n):
        # GroupNorm(1, C) == LayerNorm over (C, H, W) per sample; statistics
        # over interior pixels only.  Fused single pass (E[x^2] - mean^2,
        # clamped >= 0) with the affine folded into one mul + one add.
        vm = v * mask
        s1 = jnp.sum(vm)
        s2 = jnp.sum(v * vm)            # mask in {0,1}  =>  vm*vm == v*vm
        mean = s1 / n
        var = jnp.maximum(s2 / n - mean * mean, 0.0)
        inv = jax.lax.rsqrt(var + _EPS)
        scale = inv * gamma             # (cout, 1)
        shift = beta - mean * scale     # (cout, 1)
        return v * scale + shift

    for b in range(bt):   # tiny static batch-block loop (bt defaults to 1)
        # --- conv1: im2col taps straight from the bf16 input block ----------
        for t, o in enumerate(offs):
            tap_ref[t * cin:(t + 1) * cin, :] = (
                x_ref[b, 0:cin, front + o:front + o + Np_pad])
        h = jnp.dot(w1_ref[...], tap_ref[0:9 * cin, :],
                    preferred_element_type=jnp.float32)        # (cmid, Np_pad)
        h = jax.nn.gelu(group_norm(h, float(H * W * cmid)), approximate=True)
        # Masked writeback re-zeroes the halo/tail -> zero padding for conv2.
        h_ref[:, front:front + Np_pad] = (h * mask).astype(jnp.bfloat16)

        # --- conv2 -----------------------------------------------------------
        for t, o in enumerate(offs):
            tap_ref[t * cmid:(t + 1) * cmid, :] = (
                h_ref[0:cmid, front + o:front + o + Np_pad])
        y = jnp.dot(w2_ref[...], tap_ref[0:9 * cmid, :],
                    preferred_element_type=jnp.float32)        # (cout, Np_pad)
        y = group_norm(y, float(H * W * cout))
        if residual:
            # Re-read the residual at the add site (only valid for Cin==Cout);
            # adds the bf16-staged x (tiny precision diff vs f32 reference).
            y = y + x_ref[b, 0:cin, front:front + Np_pad].astype(jnp.float32)
        o_ref[b, :, :] = jax.nn.gelu(y, approximate=True).astype(o_ref.dtype)


def double_convolution(x, w1, w2, gamma, beta, *, residual=False,
                       batch_block=None, out_dtype=jnp.float32):
    """x: (B, Cin, H, W); w1: (Cmid, Cin, 3, 3); w2: (Cout, Cmid, 3, 3)."""
    B, Cin, H, W = x.shape
    Cmid = w1.shape[0]
    Cout = w2.shape[0]
    # The module reuses a single GroupNorm(1, out_channels) after both convs,
    # which only type-checks when mid_channels == out_channels (the default).
    assert Cmid == Cout
    if residual:
        assert Cin == Cout

    Hp, Wp = H + 2, W + 2
    Np = Hp * Wp
    Np_pad = ((Np + 127) // 128) * 128       # lane-dense output width
    front = ((Wp + 1 + 7) // 8) * 8          # >= Wp + 1 (max tap shift)
    total = front + Np_pad + front
    cmax = max(Cin, Cmid)

    # Small batch block (default 1): more grid steps -> real pipelining and
    # better dual-TensorCore balance; per-step overhead (~0.35us) is noise.
    bt = batch_block if batch_block is not None else 1
    assert B % bt == 0

    # Channel-major, bf16 *before* padding (halves wrapper-side pad traffic),
    # spatially padded, flattened, plus zero slack columns on both sides.
    x_bf = x.astype(jnp.bfloat16)
    x_p = jnp.pad(x_bf, ((0, 0), (0, 0), (1, 1), (1, 1)))
    x_staged = jnp.pad(x_p.reshape(B, Cin, Np),
                       ((0, 0), (0, 0), (front, (Np_pad - Np) + front)))

    # Weights as (Cout, 9*Cin): conv == single matmul against the tap matrix.
    # Column order (dh, dw, ci) matches the tap-scratch row order in-kernel.
    w1t = jnp.transpose(w1, (2, 3, 1, 0)).reshape(9 * Cin, Cmid).T
    w2t = jnp.transpose(w2, (2, 3, 1, 0)).reshape(9 * Cmid, Cout).T
    w1t = w1t.astype(jnp.bfloat16)
    w2t = w2t.astype(jnp.bfloat16)

    g = gamma.reshape(Cout, 1).astype(jnp.float32)
    b = beta.reshape(Cout, 1).astype(jnp.float32)

    rows = jnp.arange(Hp)[:, None]
    cols = jnp.arange(Wp)[None, :]
    interior = (rows >= 1) & (rows <= H) & (cols >= 1) & (cols <= W)
    mask = jnp.pad(interior.reshape(1, Np).astype(jnp.float32),
                   ((0, 0), (0, Np_pad - Np)))

    kernel = functools.partial(
        _double_conv_kernel, H=H, W=W, front=front, Np_pad=Np_pad, bt=bt,
        cin=Cin, cmid=Cmid, cout=Cout, residual=residual)

    out_itemsize = jnp.dtype(out_dtype).itemsize
    # VMEM budget: double-buffered in/out blocks + weights + bf16 scratches.
    vmem_need = (2 * bt * Cin * total * 2              # input block (bf16) x2
                 + 2 * bt * Cout * Np_pad * out_itemsize   # output block x2
                 + (w1t.size + w2t.size) * 2           # weights (bf16)
                 + Cmid * total * 2                    # h scratch (bf16)
                 + 9 * cmax * Np_pad * 2               # tap scratch (bf16)
                 + (1 << 20))
    try:
        phys_vmem = int(getattr(pltpu.get_tpu_info(), "vmem_capacity_bytes",
                                64 * 1024 * 1024))
    except Exception:  # pragma: no cover - conservative fallback
        phys_vmem = 64 * 1024 * 1024
    vmem_limit = int(min(max(32 * 1024 * 1024, vmem_need * 3 // 2),
                         phys_vmem - (2 << 20)))

    flops = 2 * B * H * W * 9 * (Cin * Cmid + Cmid * Cout)
    bytes_accessed = (x_staged.size * 2 + (w1t.size + w2t.size) * 2
                      + (g.size + b.size + mask.size) * 4
                      + B * Cout * Np_pad * out_itemsize)
    cost = pl.CostEstimate(flops=flops,
                           transcendentals=B * H * W * (Cmid + Cout),
                           bytes_accessed=bytes_accessed)

    # TODO(synk): for production-size images (e.g. 256x256x64) whole-image
    # blocks exceed v7x's 64 MiB VMEM; GroupNorm(1, C)'s per-sample global
    # statistics mean halo'd row tiling needs a multi-pass (stats-then-apply)
    # structure, so it is left out of this small-shape version.
    out_flat = pl.pallas_call(
        kernel,
        out_shape=jax.ShapeDtypeStruct((B, Cout, Np_pad), out_dtype),
        grid_spec=pltpu.PrefetchScalarGridSpec(
            num_scalar_prefetch=0,
            grid=(B // bt,),
            in_specs=[
                pl.BlockSpec((bt, Cin, total), lambda i: (i, 0, 0)),
                pl.BlockSpec((Cmid, 9 * Cin), lambda i: (0, 0)),
                pl.BlockSpec((Cout, 9 * Cmid), lambda i: (0, 0)),
                pl.BlockSpec((Cout, 1), lambda i: (0, 0)),
                pl.BlockSpec((Cout, 1), lambda i: (0, 0)),
                pl.BlockSpec((1, Np_pad), lambda i: (0, 0)),
            ],
            out_specs=pl.BlockSpec((bt, Cout, Np_pad), lambda i: (i, 0, 0)),
            scratch_shapes=[
                pltpu.VMEM((Cmid, total), jnp.bfloat16),       # intermediate h
                pltpu.VMEM((9 * cmax, Np_pad), jnp.bfloat16),  # im2col taps
            ],
        ),
        compiler_params=pltpu.CompilerParams(
            dimension_semantics=("parallel",),
            vmem_limit_bytes=vmem_limit),
        cost_estimate=cost,
    )(x_staged, w1t, w2t, g, b, mask)

    # (B, Cout, Np_pad) -> crop lane pad -> (B, Cout, Hp, Wp) -> crop halo.
    out = out_flat[:, :, :Np].reshape(B, Cout, Hp, Wp)[:, :, 1:H + 1, 1:W + 1]
    return out


def _reference(x, w1, w2, gamma, beta, residual=False):
    """Pure-JAX reference matching the PyTorch forward (f32, exact GELU)."""
    def conv(v, w):
        return jax.lax.conv_general_dilated(
            v, w, window_strides=(1, 1), padding=((1, 1), (1, 1)),
            dimension_numbers=("NCHW", "OIHW", "NCHW"),
            precision=jax.lax.Precision.HIGHEST)

    def gn(v):
        mean = jnp.mean(v, axis=(1, 2, 3), keepdims=True)
        var = jnp.var(v, axis=(1, 2, 3), keepdims=True)
        vn = (v - mean) / jnp.sqrt(var + _EPS)
        return vn * gamma.reshape(1, -1, 1, 1) + beta.reshape(1, -1, 1, 1)

    h = _gelu_exact(gn(conv(x, w1)))
    h = gn(conv(h, w2))
    if residual:
        h = h + x
    return _gelu_exact(h)


if __name__ == "__main__":
    B, Cin, Cmid, Cout, H, W = 2, 4, 8, 8, 16, 16

    key = jax.random.PRNGKey(0)
    kx, kw1, kw2, kg, kb = jax.random.split(key, 5)
    x = jax.random.normal(kx, (B, Cin, H, W), jnp.float32)

    # Deterministic synthetic parameters (PyTorch-style kaiming-uniform bounds).
    bound1 = 1.0 / math.sqrt(Cin * 9)
    w1 = jax.random.uniform(kw1, (Cmid, Cin, 3, 3), jnp.float32, -bound1, bound1)
    bound2 = 1.0 / math.sqrt(Cmid * 9)
    w2 = jax.random.uniform(kw2, (Cout, Cmid, 3, 3), jnp.float32, -bound2, bound2)
    gamma = 1.0 + 0.1 * jax.random.normal(kg, (Cout,), jnp.float32)
    beta = 0.1 * jax.random.normal(kb, (Cout,), jnp.float32)

    out = double_convolution(x, w1, w2, gamma, beta, residual=False)
    out = jax.block_until_ready(out)

    ref = _reference(x, w1, w2, gamma, beta, residual=False)
    # Tolerance covers bf16 matmul inputs + tanh-approx GELU vs exact f32 ref.
    np.testing.assert_allclose(np.asarray(out), np.asarray(ref),
                               rtol=3e-2, atol=3e-2)
    print("KERNEL_OK")
</pallas_src>

<mosaic_0001>
module attributes {stable_mosaic.version = 11 : i64} {
  func.func @_double_conv_kernel(%arg0: i32, %arg1: memref<1x4x432xbf16, #tpu.memory_space<vmem>>, %arg2: memref<8x36xbf16, #tpu.memory_space<vmem>>, %arg3: memref<8x72xbf16, #tpu.memory_space<vmem>>, %arg4: memref<8x1xf32, #tpu.memory_space<vmem>>, %arg5: memref<8x1xf32, #tpu.memory_space<vmem>>, %arg6: memref<1x384xf32, #tpu.memory_space<vmem>>, %arg7: memref<1x8x384xf32, #tpu.memory_space<vmem>>, %arg8: memref<8x432xbf16, #tpu.memory_space<vmem>>, %arg9: memref<72x384xbf16, #tpu.memory_space<vmem>>) attributes {dimension_semantics = [#tpu.dimension_semantics<parallel>], iteration_bounds = array<i64: 2>, scalar_prefetch = 0 : i64, scratch_operands = 2 : i64, tpu.core_type = #tpu.core_type<tc>, window_params = [{transform_indices = @transform_0, window_bounds = array<i64: 1, 4, 432>}, {pipeline_mode = #tpu.pipeline_mode<synchronous>, transform_indices = @transform_1, window_bounds = array<i64: 8, 36>}, {pipeline_mode = #tpu.pipeline_mode<synchronous>, transform_indices = @transform_2, window_bounds = array<i64: 8, 72>}, {pipeline_mode = #tpu.pipeline_mode<synchronous>, transform_indices = @transform_3, window_bounds = array<i64: 8, 1>}, {pipeline_mode = #tpu.pipeline_mode<synchronous>, transform_indices = @transform_4, window_bounds = array<i64: 8, 1>}, {pipeline_mode = #tpu.pipeline_mode<synchronous>, transform_indices = @transform_5, window_bounds = array<i64: 1, 384>}, {transform_indices = @transform_6, window_bounds = array<i64: 1, 8, 384>}]} {
    %c0 = arith.constant 0 : index
    %c0_0 = arith.constant 0 : index
    %0 = vector.load %arg6[%c0, %c0_0] : memref<1x384xf32, #tpu.memory_space<vmem>>, vector<1x384xf32>
    %c0_1 = arith.constant 0 : index
    %c0_2 = arith.constant 0 : index
    %1 = vector.load %arg4[%c0_1, %c0_2] : memref<8x1xf32, #tpu.memory_space<vmem>>, vector<8x1xf32>
    %c0_3 = arith.constant 0 : index
    %c0_4 = arith.constant 0 : index
    %2 = vector.load %arg5[%c0_3, %c0_4] : memref<8x1xf32, #tpu.memory_space<vmem>>, vector<8x1xf32>
    %cst = arith.constant 0.000000e+00 : bf16
    %3 = vector.broadcast %cst : bf16 to vector<8x24xbf16>
    %c0_5 = arith.constant 0 : index
    %c0_6 = arith.constant 0 : index
    %4 = vector.load %arg8[%c0_5, %c0_6] : memref<8x432xbf16, #tpu.memory_space<vmem>>, vector<8x24xbf16>
    tpu.vector_store %arg8[%c0_5, %c0_6], %3 {strides = array<i32>} : memref<8x432xbf16, #tpu.memory_space<vmem>>, vector<8x24xbf16>,
    %c0_7 = arith.constant 0 : index
    %c408 = arith.constant 408 : index
    %5 = vector.load %arg8[%c0_7, %c408] : memref<8x432xbf16, #tpu.memory_space<vmem>>, vector<8x24xbf16>
    tpu.vector_store %arg8[%c0_7, %c408], %3 {strides = array<i32>} : memref<8x432xbf16, #tpu.memory_space<vmem>>, vector<8x24xbf16>,
    %c0_8 = arith.constant 0 : index
    %c0_9 = arith.constant 0 : index
    %c5 = arith.constant 5 : index
    %6 = vector.load %arg1[%c0_8, %c0_9, %c5] : memref<1x4x432xbf16, #tpu.memory_space<vmem>>, vector<1x4x384xbf16>
    %7 = vector.shape_cast %6 : vector<1x4x384xbf16> to vector<4x384xbf16>
    %c0_10 = arith.constant 0 : index
    %c0_11 = arith.constant 0 : index
    %8 = vector.load %arg9[%c0_10, %c0_11] : memref<72x384xbf16, #tpu.memory_space<vmem>>, vector<4x384xbf16>
    tpu.vector_store %arg9[%c0_10, %c0_11], %7 {strides = array<i32>} : memref<72x384xbf16, #tpu.memory_space<vmem>>, vector<4x384xbf16>,
    %c0_12 = arith.constant 0 : index
    %c0_13 = arith.constant 0 : index
    %c6 = arith.constant 6 : index
    %9 = vector.load %arg1[%c0_12, %c0_13, %c6] : memref<1x4x432xbf16, #tpu.memory_space<vmem>>, vector<1x4x384xbf16>
    %10 = vector.shape_cast %9 : vector<1x4x384xbf16> to vector<4x384xbf16>
    %c4 = arith.constant 4 : index
    %c0_14 = arith.constant 0 : index
    %11 = vector.load %arg9[%c4, %c0_14] : memref<72x384xbf16, #tpu.memory_space<vmem>>, vector<4x384xbf16>
    tpu.vector_store %arg9[%c4, %c0_14], %10 {strides = array<i32>} : memref<72x384xbf16, #tpu.memory_space<vmem>>, vector<4x384xbf16>,
    %c0_15 = arith.constant 0 : index
    %c0_16 = arith.constant 0 : index
    %c7 = arith.constant 7 : index
    %12 = vector.load %arg1[%c0_15, %c0_16, %c7] : memref<1x4x432xbf16, #tpu.memory_space<vmem>>, vector<1x4x384xbf16>
    %13 = vector.shape_cast %12 : vector<1x4x384xbf16> to vector<4x384xbf16>
    %c8 = arith.constant 8 : index
    %c0_17 = arith.constant 0 : index
    %14 = vector.load %arg9[%c8, %c0_17] : memref<72x384xbf16, #tpu.memory_space<vmem>>, vector<4x384xbf16>
    tpu.vector_store %arg9[%c8, %c0_17], %13 {strides = array<i32>} : memref<72x384xbf16, #tpu.memory_space<vmem>>, vector<4x384xbf16>,
    %c0_18 = arith.constant 0 : index
    %c0_19 = arith.constant 0 : index
    %c23 = arith.constant 23 : index
    %15 = vector.load %arg1[%c0_18, %c0_19, %c23] : memref<1x4x432xbf16, #tpu.memory_space<vmem>>, vector<1x4x384xbf16>
    %16 = vector.shape_cast %15 : vector<1x4x384xbf16> to vector<4x384xbf16>
    %c12 = arith.constant 12 : index
    %c0_20 = arith.constant 0 : index
    %17 = vector.load %arg9[%c12, %c0_20] : memref<72x384xbf16, #tpu.memory_space<vmem>>, vector<4x384xbf16>
    tpu.vector_store %arg9[%c12, %c0_20], %16 {strides = array<i32>} : memref<72x384xbf16, #tpu.memory_space<vmem>>, vector<4x384xbf16>,
    %c0_21 = arith.constant 0 : index
    %c0_22 = arith.constant 0 : index
    %c24 = arith.constant 24 : index
    %18 = vector.load %arg1[%c0_21, %c0_22, %c24] : memref<1x4x432xbf16, #tpu.memory_space<vmem>>, vector<1x4x384xbf16>
    %19 = vector.shape_cast %18 : vector<1x4x384xbf16> to vector<4x384xbf16>
    %c16 = arith.constant 16 : index
    %c0_23 = arith.constant 0 : index
    %20 = vector.load %arg9[%c16, %c0_23] : memref<72x384xbf16, #tpu.memory_space<vmem>>, vector<4x384xbf16>
    tpu.vector_store %arg9[%c16, %c0_23], %19 {strides = array<i32>} : memref<72x384xbf16, #tpu.memory_space<vmem>>, vector<4x384xbf16>,
    %c0_24 = arith.constant 0 : index
    %c0_25 = arith.constant 0 : index
    %c25 = arith.constant 25 : index
    %21 = vector.load %arg1[%c0_24, %c0_25, %c25] : memref<1x4x432xbf16, #tpu.memory_space<vmem>>, vector<1x4x384xbf16>
    %22 = vector.shape_cast %21 : vector<1x4x384xbf16> to vector<4x384xbf16>
    %c20 = arith.constant 20 : index
    %c0_26 = arith.constant 0 : index
    %23 = vector.load %arg9[%c20, %c0_26] : memref<72x384xbf16, #tpu.memory_space<vmem>>, vector<4x384xbf16>
    tpu.vector_store %arg9[%c20, %c0_26], %22 {strides = array<i32>} : memref<72x384xbf16, #tpu.memory_space<vmem>>, vector<4x384xbf16>,
    %c0_27 = arith.constant 0 : index
    %c0_28 = arith.constant 0 : index
    %c41 = arith.constant 41 : index
    %24 = vector.load %arg1[%c0_27, %c0_28, %c41] : memref<1x4x432xbf16, #tpu.memory_space<vmem>>, vector<1x4x384xbf16>
    %25 = vector.shape_cast %24 : vector<1x4x384xbf16> to vector<4x384xbf16>
    %c24_29 = arith.constant 24 : index
    %c0_30 = arith.constant 0 : index
    %26 = vector.load %arg9[%c24_29, %c0_30] : memref<72x384xbf16, #tpu.memory_space<vmem>>, vector<4x384xbf16>
    tpu.vector_store %arg9[%c24_29, %c0_30], %25 {strides = array<i32>} : memref<72x384xbf16, #tpu.memory_space<vmem>>, vector<4x384xbf16>,
    %c0_31 = arith.constant 0 : index
    %c0_32 = arith.constant 0 : index
    %c42 = arith.constant 42 : index
    %27 = vector.load %arg1[%c0_31, %c0_32, %c42] : memref<1x4x432xbf16, #tpu.memory_space<vmem>>, vector<1x4x384xbf16>
    %28 = vector.shape_cast %27 : vector<1x4x384xbf16> to vector<4x384xbf16>
    %c28 = arith.constant 28 : index
    %c0_33 = arith.constant 0 : index
    %29 = vector.load %arg9[%c28, %c0_33] : memref<72x384xbf16, #tpu.memory_space<vmem>>, vector<4x384xbf16>
    tpu.vector_store %arg9[%c28, %c0_33], %28 {strides = array<i32>} : memref<72x384xbf16, #tpu.memory_space<vmem>>, vector<4x384xbf16>,
    %c0_34 = arith.constant 0 : index
    %c0_35 = arith.constant 0 : index
    %c43 = arith.constant 43 : index
    %30 = vector.load %arg1[%c0_34, %c0_35, %c43] : memref<1x4x432xbf16, #tpu.memory_space<vmem>>, vector<1x4x384xbf16>
    %31 = vector.shape_cast %30 : vector<1x4x384xbf16> to vector<4x384xbf16>
    %c32 = arith.constant 32 : index
    %c0_36 = arith.constant 0 : index
    %32 = vector.load %arg9[%c32, %c0_36] : memref<72x384xbf16, #tpu.memory_space<vmem>>, vector<4x384xbf16>
    tpu.vector_store %arg9[%c32, %c0_36], %31 {strides = array<i32>} : memref<72x384xbf16, #tpu.memory_space<vmem>>, vector<4x384xbf16>,
    %c0_37 = arith.constant 0 : index
    %c0_38 = arith.constant 0 : index
    %33 = vector.load %arg2[%c0_37, %c0_38] : memref<8x36xbf16, #tpu.memory_space<vmem>>, vector<8x36xbf16>
    %c0_39 = arith.constant 0 : index
    %c0_40 = arith.constant 0 : index
    %34 = vector.load %arg9[%c0_39, %c0_40] : memref<72x384xbf16, #tpu.memory_space<vmem>>, vector<36x384xbf16>
    %cst_41 = arith.constant dense<0.000000e+00> : vector<8x384xf32>
    %35 = tpu.matmul %33, %34, %cst_41 {dimension_numbers = #tpu.dot_dimension_numbers<[1], [0], [0], [1], [0, 0, 1, 1], [], []>} : vector<8x36xbf16>, vector<36x384xbf16>, vector<8x384xf32> -> vector<8x384xf32>
    %36 = vector.broadcast %0 : vector<1x384xf32> to vector<8x384xf32>
    %37 = arith.mulf %35, %36 : vector<8x384xf32>
    %38 = vector.shape_cast %37 : vector<8x384xf32> to vector<1x8x384xf32>
    %cst_42 = arith.constant dense<0.000000e+00> : vector<1xf32>
    %39 = vector.multi_reduction <add>, %38, %cst_42 [1, 2] : vector<1x8x384xf32> to vector<1xf32>
    %40 = vector.shape_cast %39 : vector<1xf32> to vector<1x1x1xf32>
    %41 = vector.extract %40[0, 0, 0] : f32 from vector<1x1x1xf32>
    %42 = arith.mulf %35, %37 : vector<8x384xf32>
    %43 = vector.shape_cast %42 : vector<8x384xf32> to vector<1x8x384xf32>
    %cst_43 = arith.constant dense<0.000000e+00> : vector<1xf32>
    %44 = vector.multi_reduction <add>, %43, %cst_43 [1, 2] : vector<1x8x384xf32> to vector<1xf32>
    %45 = vector.shape_cast %44 : vector<1xf32> to vector<1x1x1xf32>
    %46 = vector.extract %45[0, 0, 0] : f32 from vector<1x1x1xf32>
    %cst_44 = arith.constant 2.048000e+03 : f32
    %47 = arith.divf %41, %cst_44 : f32
    %cst_45 = arith.constant 2.048000e+03 : f32
    %48 = arith.divf %46, %cst_45 : f32
    %49 = arith.mulf %47, %47 : f32
    %50 = arith.subf %48, %49 : f32
    %cst_46 = arith.constant 0.000000e+00 : f32
    %51 = arith.maximumf %50, %cst_46 : f32
    %cst_47 = arith.constant 9.99999974E-6 : f32
    %52 = arith.addf %51, %cst_47 : f32
    %53 = math.rsqrt %52 : f32
    %54 = vector.broadcast %53 : f32 to vector<8x1xf32>
    %55 = arith.mulf %54, %1 : vector<8x1xf32>
    %56 = vector.broadcast %47 : f32 to vector<8x1xf32>
    %57 = arith.mulf %56, %55 : vector<8x1xf32>
    %58 = arith.subf %2, %57 : vector<8x1xf32>
    %59 = vector.broadcast %55 : vector<8x1xf32> to vector<8x384xf32>
    %60 = arith.mulf %35, %59 : vector<8x384xf32>
    %61 = vector.broadcast %58 : vector<8x1xf32> to vector<8x384xf32>
    %62 = arith.addf %60, %61 : vector<8x384xf32>
    %63 = arith.mulf %62, %62 : vector<8x384xf32>
    %64 = arith.mulf %62, %63 : vector<8x384xf32>
    %cst_48 = arith.constant 4.471500e-02 : f32
    %65 = vector.broadcast %cst_48 : f32 to vector<8x384xf32>
    %66 = arith.mulf %65, %64 : vector<8x384xf32>
    %67 = arith.addf %62, %66 : vector<8x384xf32>
    %cst_49 = arith.constant 0.797884583 : f32
    %68 = vector.broadcast %cst_49 : f32 to vector<8x384xf32>
    %69 = arith.mulf %68, %67 : vector<8x384xf32>
    %70 = math.tanh %69 : vector<8x384xf32>
    %cst_50 = arith.constant 1.000000e+00 : f32
    %71 = vector.broadcast %cst_50 : f32 to vector<8x384xf32>
    %72 = arith.addf %71, %70 : vector<8x384xf32>
    %cst_51 = arith.constant 5.000000e-01 : f32
    %73 = vector.broadcast %cst_51 : f32 to vector<8x384xf32>
    %74 = arith.mulf %73, %72 : vector<8x384xf32>
    %75 = arith.mulf %62, %74 : vector<8x384xf32>
    %76 = vector.broadcast %0 : vector<1x384xf32> to vector<8x384xf32>
    %77 = arith.mulf %75, %76 : vector<8x384xf32>
    %78 = arith.truncf %77 : vector<8x384xf32> to vector<8x384xbf16>
    %c0_52 = arith.constant 0 : index
    %c24_53 = arith.constant 24 : index
    %79 = vector.load %arg8[%c0_52, %c24_53] : memref<8x432xbf16, #tpu.memory_space<vmem>>, vector<8x384xbf16>
    tpu.vector_store %arg8[%c0_52, %c24_53], %78 {strides = array<i32>} : memref<8x432xbf16, #tpu.memory_space<vmem>>, vector<8x384xbf16>,
    %c0_54 = arith.constant 0 : index
    %c5_55 = arith.constant 5 : index
    %80 = vector.load %arg8[%c0_54, %c5_55] : memref<8x432xbf16, #tpu.memory_space<vmem>>, vector<8x384xbf16>
    %c0_56 = arith.constant 0 : index
    %c0_57 = arith.constant 0 : index
    %81 = vector.load %arg9[%c0_56, %c0_57] : memref<72x384xbf16, #tpu.memory_space<vmem>>, vector<8x384xbf16>
    tpu.vector_store %arg9[%c0_56, %c0_57], %80 {strides = array<i32>} : memref<72x384xbf16, #tpu.memory_space<vmem>>, vector<8x384xbf16>,
    %c0_58 = arith.constant 0 : index
    %c6_59 = arith.constant 6 : index
    %82 = vector.load %arg8[%c0_58, %c6_59] : memref<8x432xbf16, #tpu.memory_space<vmem>>, vector<8x384xbf16>
    %c8_60 = arith.constant 8 : index
    %c0_61 = arith.constant 0 : index
    %83 = vector.load %arg9[%c8_60, %c0_61] : memref<72x384xbf16, #tpu.memory_space<vmem>>, vector<8x384xbf16>
    tpu.vector_store %arg9[%c8_60, %c0_61], %82 {strides = array<i32>} : memref<72x384xbf16, #tpu.memory_space<vmem>>, vector<8x384xbf16>,
    %c0_62 = arith.constant 0 : index
    %c7_63 = arith.constant 7 : index
    %84 = vector.load %arg8[%c0_62, %c7_63] : memref<8x432xbf16, #tpu.memory_space<vmem>>, vector<8x384xbf16>
    %c16_64 = arith.constant 16 : index
    %c0_65 = arith.constant 0 : index
    %85 = vector.load %arg9[%c16_64, %c0_65] : memref<72x384xbf16, #tpu.memory_space<vmem>>, vector<8x384xbf16>
    tpu.vector_store %arg9[%c16_64, %c0_65], %84 {strides = array<i32>} : memref<72x384xbf16, #tpu.memory_space<vmem>>, vector<8x384xbf16>,
    %c0_66 = arith.constant 0 : index
    %c23_67 = arith.constant 23 : index
    %86 = vector.load %arg8[%c0_66, %c23_67] : memref<8x432xbf16, #tpu.memory_space<vmem>>, vector<8x384xbf16>
    %c24_68 = arith.constant 24 : index
    %c0_69 = arith.constant 0 : index
    %87 = vector.load %arg9[%c24_68, %c0_69] : memref<72x384xbf16, #tpu.memory_space<vmem>>, vector<8x384xbf16>
    tpu.vector_store %arg9[%c24_68, %c0_69], %86 {strides = array<i32>} : memref<72x384xbf16, #tpu.memory_space<vmem>>, vector<8x384xbf16>,
    %c0_70 = arith.constant 0 : index
    %c24_71 = arith.constant 24 : index
    %88 = vector.load %arg8[%c0_70, %c24_71] : memref<8x432xbf16, #tpu.memory_space<vmem>>, vector<8x384xbf16>
    %c32_72 = arith.constant 32 : index
    %c0_73 = arith.constant 0 : index
    %89 = vector.load %arg9[%c32_72, %c0_73] : memref<72x384xbf16, #tpu.memory_space<vmem>>, vector<8x384xbf16>
    tpu.vector_store %arg9[%c32_72, %c0_73], %88 {strides = array<i32>} : memref<72x384xbf16, #tpu.memory_space<vmem>>, vector<8x384xbf16>,
    %c0_74 = arith.constant 0 : index
    %c25_75 = arith.constant 25 : index
    %90 = vector.load %arg8[%c0_74, %c25_75] : memref<8x432xbf16, #tpu.memory_space<vmem>>, vector<8x384xbf16>
    %c40 = arith.constant 40 : index
    %c0_76 = arith.constant 0 : index
    %91 = vector.load %arg9[%c40, %c0_76] : memref<72x384xbf16, #tpu.memory_space<vmem>>, vector<8x384xbf16>
    tpu.vector_store %arg9[%c40, %c0_76], %90 {strides = array<i32>} : memref<72x384xbf16, #tpu.memory_space<vmem>>, vector<8x384xbf16>,
    %c0_77 = arith.constant 0 : index
    %c41_78 = arith.constant 41 : index
    %92 = vector.load %arg8[%c0_77, %c41_78] : memref<8x432xbf16, #tpu.memory_space<vmem>>, vector<8x384xbf16>
    %c48 = arith.constant 48 : index
    %c0_79 = arith.constant 0 : index
    %93 = vector.load %arg9[%c48, %c0_79] : memref<72x384xbf16, #tpu.memory_space<vmem>>, vector<8x384xbf16>
    tpu.vector_store %arg9[%c48, %c0_79], %92 {strides = array<i32>} : memref<72x384xbf16, #tpu.memory_space<vmem>>, vector<8x384xbf16>,
    %c0_80 = arith.constant 0 : index
    %c42_81 = arith.constant 42 : index
    %94 = vector.load %arg8[%c0_80, %c42_81] : memref<8x432xbf16, #tpu.memory_space<vmem>>, vector<8x384xbf16>
    %c56 = arith.constant 56 : index
    %c0_82 = arith.constant 0 : index
    %95 = vector.load %arg9[%c56, %c0_82] : memref<72x384xbf16, #tpu.memory_space<vmem>>, vector<8x384xbf16>
    tpu.vector_store %arg9[%c56, %c0_82], %94 {strides = array<i32>} : memref<72x384xbf16, #tpu.memory_space<vmem>>, vector<8x384xbf16>,
    %c0_83 = arith.constant 0 : index
    %c43_84 = arith.constant 43 : index
    %96 = vector.load %arg8[%c0_83, %c43_84] : memref<8x432xbf16, #tpu.memory_space<vmem>>, vector<8x384xbf16>
    %c64 = arith.constant 64 : index
    %c0_85 = arith.constant 0 : index
    %97 = vector.load %arg9[%c64, %c0_85] : memref<72x384xbf16, #tpu.memory_space<vmem>>, vector<8x384xbf16>
    tpu.vector_store %arg9[%c64, %c0_85], %96 {strides = array<i32>} : memref<72x384xbf16, #tpu.memory_space<vmem>>, vector<8x384xbf16>,
    %c0_86 = arith.constant 0 : index
    %c0_87 = arith.constant 0 : index
    %98 = vector.load %arg3[%c0_86, %c0_87] : memref<8x72xbf16, #tpu.memory_space<vmem>>, vector<8x72xbf16>
    %c0_88 = arith.constant 0 : index
    %c0_89 = arith.constant 0 : index
    %99 = vector.load %arg9[%c0_88, %c0_89] : memref<72x384xbf16, #tpu.memory_space<vmem>>, vector<72x384xbf16>
    %cst_90 = arith.constant dense<0.000000e+00> : vector<8x384xf32>
    %100 = tpu.matmul %98, %99, %cst_90 {dimension_numbers = #tpu.dot_dimension_numbers<[1], [0], [0], [1], [0, 0, 1, 1], [], []>} : vector<8x72xbf16>, vector<72x384xbf16>, vector<8x384xf32> -> vector<8x384xf32>
    %101 = vector.broadcast %0 : vector<1x384xf32> to vector<8x384xf32>
    %102 = arith.mulf %100, %101 : vector<8x384xf32>
    %103 = vector.shape_cast %102 : vector<8x384xf32> to vector<1x8x384xf32>
    %cst_91 = arith.constant dense<0.000000e+00> : vector<1xf32>
    %104 = vector.multi_reduction <add>, %103, %cst_91 [1, 2] : vector<1x8x384xf32> to vector<1xf32>
    %105 = vector.shape_cast %104 : vector<1xf32> to vector<1x1x1xf32>
    %106 = vector.extract %105[0, 0, 0] : f32 from vector<1x1x1xf32>
    %107 = arith.mulf %100, %102 : vector<8x384xf32>
    %108 = vector.shape_cast %107 : vector<8x384xf32> to vector<1x8x384xf32>
    %cst_92 = arith.constant dense<0.000000e+00> : vector<1xf32>
    %109 = vector.multi_reduction <add>, %108, %cst_92 [1, 2] : vector<1x8x384xf32> to vector<1xf32>
    %110 = vector.shape_cast %109 : vector<1xf32> to vector<1x1x1xf32>
    %111 = vector.extract %110[0, 0, 0] : f32 from vector<1x1x1xf32>
    %cst_93 = arith.constant 2.048000e+03 : f32
    %112 = arith.divf %106, %cst_93 : f32
    %cst_94 = arith.constant 2.048000e+03 : f32
    %113 = arith.divf %111, %cst_94 : f32
    %114 = arith.mulf %112, %112 : f32
    %115 = arith.subf %113, %114 : f32
    %cst_95 = arith.constant 0.000000e+00 : f32
    %116 = arith.maximumf %115, %cst_95 : f32
    %cst_96 = arith.constant 9.99999974E-6 : f32
    %117 = arith.addf %116, %cst_96 : f32
    %118 = math.rsqrt %117 : f32
    %119 = vector.broadcast %118 : f32 to vector<8x1xf32>
    %120 = arith.mulf %119, %1 : vector<8x1xf32>
    %121 = vector.broadcast %112 : f32 to vector<8x1xf32>
    %122 = arith.mulf %121, %120 : vector<8x1xf32>
    %123 = arith.subf %2, %122 : vector<8x1xf32>
    %124 = vector.broadcast %120 : vector<8x1xf32> to vector<8x384xf32>
    %125 = arith.mulf %100, %124 : vector<8x384xf32>
    %126 = vector.broadcast %123 : vector<8x1xf32> to vector<8x384xf32>
    %127 = arith.addf %125, %126 : vector<8x384xf32>
    %128 = arith.mulf %127, %127 : vector<8x384xf32>
    %129 = arith.mulf %127, %128 : vector<8x384xf32>
    %cst_97 = arith.constant 4.471500e-02 : f32
    %130 = vector.broadcast %cst_97 : f32 to vector<8x384xf32>
    %131 = arith.mulf %130, %129 : vector<8x384xf32>
    %132 = arith.addf %127, %131 : vector<8x384xf32>
    %cst_98 = arith.constant 0.797884583 : f32
    %133 = vector.broadcast %cst_98 : f32 to vector<8x384xf32>
    %134 = arith.mulf %133, %132 : vector<8x384xf32>
    %135 = math.tanh %134 : vector<8x384xf32>
    %cst_99 = arith.constant 1.000000e+00 : f32
    %136 = vector.broadcast %cst_99 : f32 to vector<8x384xf32>
    %137 = arith.addf %136, %135 : vector<8x384xf32>
    %cst_100 = arith.constant 5.000000e-01 : f32
    %138 = vector.broadcast %cst_100 : f32 to vector<8x384xf32>
    %139 = arith.mulf %138, %137 : vector<8x384xf32>
    %140 = arith.mulf %127, %139 : vector<8x384xf32>
    %c0_101 = arith.constant 0 : index
    %c0_102 = arith.constant 0 : index
    %c0_103 = arith.constant 0 : index
    %141 = vector.load %arg7[%c0_101, %c0_102, %c0_103] : memref<1x8x384xf32, #tpu.memory_space<vmem>>, vector<1x8x384xf32>
    %142 = vector.shape_cast %141 : vector<1x8x384xf32> to vector<8x384xf32>
    %143 = vector.shape_cast %140 : vector<8x384xf32> to vector<1x8x384xf32>
    tpu.vector_store %arg7[%c0_101, %c0_102, %c0_103], %143 {strides = array<i32>} : memref<1x8x384xf32, #tpu.memory_space<vmem>>, vector<1x8x384xf32>,
    return
  }
  func.func @transform_0(%arg0: i32) -> (i32, i32, i32) {
    %c0_i32 = arith.constant 0 : i32
    %c0_i32_0 = arith.constant 0 : i32
    %c0_i32_1 = arith.constant 0 : i32
    return %arg0, %c0_i32, %c0_i32_0 : i32, i32, i32
  }
  func.func @transform_1(%arg0: i32) -> (i32, i32) {
    %c0_i32 = arith.constant 0 : i32
    %c0_i32_0 = arith.constant 0 : i32
    %c0_i32_1 = arith.constant 0 : i32
    return %c0_i32, %c0_i32_0 : i32, i32
  }
  func.func @transform_2(%arg0: i32) -> (i32, i32) {
    %c0_i32 = arith.constant 0 : i32
    %c0_i32_0 = arith.constant 0 : i32
    %c0_i32_1 = arith.constant 0 : i32
    return %c0_i32, %c0_i32_0 : i32, i32
  }
  func.func @transform_3(%arg0: i32) -> (i32, i32) {
    %c0_i32 = arith.constant 0 : i32
    %c0_i32_0 = arith.constant 0 : i32
    %c0_i32_1 = arith.constant 0 : i32
    return %c0_i32, %c0_i32_0 : i32, i32
  }
  func.func @transform_4(%arg0: i32) -> (i32, i32) {
    %c0_i32 = arith.constant 0 : i32
    %c0_i32_0 = arith.constant 0 : i32
    %c0_i32_1 = arith.constant 0 : i32
    return %c0_i32, %c0_i32_0 : i32, i32
  }
  func.func @transform_5(%arg0: i32) -> (i32, i32) {
    %c0_i32 = arith.constant 0 : i32
    %c0_i32_0 = arith.constant 0 : i32
    %c0_i32_1 = arith.constant 0 : i32
    return %c0_i32, %c0_i32_0 : i32, i32
  }
  func.func @transform_6(%arg0: i32) -> (i32, i32, i32) {
    %c0_i32 = arith.constant 0 : i32
    %c0_i32_0 = arith.constant 0 : i32
    %c0_i32_1 = arith.constant 0 : i32
    return %arg0, %c0_i32, %c0_i32_0 : i32, i32, i32
  }
}

</mosaic_0001>

<llo_original>
// kernel: tpu_custom_call.1
$region0: #{tpu_custom_call.1}
  #allocation0 [shape = 'u32[]', space=smem, size = 0x4, offset = 0x4, fixed_abs, tag = 'smem constant byte address 0x4 - core index']
  #allocation1 [shape = 'u32[144,128]{1,0:T(1,128)}', space=vmem, size = 0x12000, scoped, tag = 'internal scratch']
  #allocation2 [shape = 'bf16[8,432]{1,0:T(8,128)(2,1)}', space=vmem, size = 0x2000, scoped, tag = 'scratch operand']
  #allocation3 [shape = 'bf16[72,384]{1,0:T(8,128)(2,1)}', space=vmem, size = 0xd800, scoped, tag = 'scratch operand']
  %s0 = inlined_call_operand.vmem [shape: bf16[2,4,432], index: 0, kind: input, shape index: {}]
  %s1 = inlined_call_operand.vmem [shape: bf16[8,36], index: 1, kind: input, shape index: {}]
  %s2 = inlined_call_operand.vmem [shape: bf16[8,72], index: 2, kind: input, shape index: {}]
  %s3 = inlined_call_operand.vmem [shape: f32[8,1], index: 3, kind: input, shape index: {}]
  %s4 = inlined_call_operand.vmem [shape: f32[8,1], index: 4, kind: input, shape index: {}]
  %s5 = inlined_call_operand.vmem [shape: f32[1,384], index: 5, kind: input, shape index: {}]
  %s6 = inlined_call_operand.hbm [shape: f32[2,8,384], index: 6, kind: output, shape index: {}]
  %s7 = sld [smem:[#allocation0]]
  $region57: #{tpu_custom_call.1} parent=0
    _
  %s9 = ssub.s32 1, %s7
  %s10 = scalar_select 0, %s9, %s7
  $region1: #{tpu_custom_call.1} parent=0
    #allocation4 [shape = 'u8[24576]{0}', space=vmem, size = 0x6000, scoped, tag = 'output window, operand 0']
    #allocation5 [shape = 's32[2]{0}', space=sflag, size = 0x8, scoped, tag = 'scoped memory for tpu_custom_call.1']
    %11 = vsyncpa [#allocation5], 0
    %s12 = scalar_lea.sflag [#allocation5], 1
    %13 = vsyncpa %s12, 0
    loop: start=0, step=1, limit=4
    $region2: #{tpu_custom_call.1} parent=1 // loop_pre_header
      _
    $region3: #{tpu_custom_call.1} parent=1 // loop_header
      %s15 = sphi 0, %s19
      %p16 = scmp.ge.s32.totalorder %s15, 4
      %s25 = sphi 0, %s27
      %s28 = sphi 0, %s25
      %s29 = sphi 0, %s28
      %s45 = sphi 0, %s29
      %s49 = sphi 0, %s49
      %s51 = sphi 0, %s49
      %s52 = sphi 0, %s51
      %s66 = sphi 0, %s52
      %s70 = sphi 0, %s70
      %s72 = sphi 0, %s70
      %s73 = sphi 0, %s72
      %s87 = sphi 0, %s73
      %s91 = sphi 0, %s91
      %s93 = sphi 0, %s91
      %s94 = sphi 0, %s93
      %s108 = sphi 0, %s94
      %s112 = sphi 0, %s112
      %s114 = sphi 0, %s112
      %s115 = sphi 0, %s114
      %s129 = sphi 0, %s115
      %s133 = sphi 0, %s133
      %s135 = sphi 0, %s133
      %s136 = sphi 0, %s135
      %s150 = sphi 0, %s136
      %s156 = sphi 0, %s158
      %s159 = sphi 0, %s156
      %s160 = sphi 0, %s159
      %s176 = sphi 0, %s160
    $region4: #{tpu_custom_call.1} parent=1 // loop_header_branch
      %18 = sbr.rel (%p16) target = $region8
    $region5: #{tpu_custom_call.1} parent=1 // loop_body
      %s20 = ssub.s32 %s15, 1
      %s21 = ssub.s32 %s15, 2
      %s22 = sadd.s32 %s15, 1
      %s23 = ssub.s32 %s15, %s22
      %p24 = scmp.eq.s32.totalorder %s23, 0
      %s26 = sadd.s32 %s25, 1
      %s27 = scalar_select %p24, %s25, %s26
      %p30 = pneg %p24
      %p31 = scmp.eq.s32.totalorder %s15, 1
      %p32 = por %p30, %p31
      %p33 = scmp.ne.s32.totalorder %s25, %s28
      %p34 = scmp.eq.s32.totalorder %s15, 0
      %p35 = por %p33, %p34
      %p36 = scmp.ne.s32.totalorder %s25, %s28
      %p37 = scmp.eq.s32.totalorder %s20, 1
      %p38 = por %p36, %p37
      %p39 = scmp.ne.s32.totalorder %s28, %s29
      %p40 = scmp.eq.s32.totalorder %s20, 0
      %p41 = por %p39, %p40
      %p42 = scmp.ne.s32.totalorder %s28, %s29
      %p43 = scmp.eq.s32.totalorder %s21, 1
      %p44 = por %p42, %p43
      %p46 = scmp.ne.s32.totalorder %s29, %s45
      %p47 = scmp.eq.s32.totalorder %s21, 0
      %p48 = por %p46, %p47
      %s50 = sadd.s32 %s49, 1
      %p53 = scmp.eq.s32.totalorder %s15, 1
      %p54 = scmp.ne.s32.totalorder %s49, %s51
      %p55 = scmp.eq.s32.totalorder %s15, 0
      %p56 = por %p54, %p55
      %p57 = scmp.ne.s32.totalorder %s49, %s51
      %p58 = scmp.eq.s32.totalorder %s20, 1
      %p59 = por %p57, %p58
      %p60 = scmp.ne.s32.totalorder %s51, %s52
      %p61 = scmp.eq.s32.totalorder %s20, 0
      %p62 = por %p60, %p61
      %p63 = scmp.ne.s32.totalorder %s51, %s52
      %p64 = scmp.eq.s32.totalorder %s21, 1
      %p65 = por %p63, %p64
      %p67 = scmp.ne.s32.totalorder %s52, %s66
      %p68 = scmp.eq.s32.totalorder %s21, 0
      %p69 = por %p67, %p68
      %s71 = sadd.s32 %s70, 1
      %p74 = scmp.eq.s32.totalorder %s15, 1
      %p75 = scmp.ne.s32.totalorder %s70, %s72
      %p76 = scmp.eq.s32.totalorder %s15, 0
      %p77 = por %p75, %p76
      %p78 = scmp.ne.s32.totalorder %s70, %s72
      %p79 = scmp.eq.s32.totalorder %s20, 1
      %p80 = por %p78, %p79
      %p81 = scmp.ne.s32.totalorder %s72, %s73
      %p82 = scmp.eq.s32.totalorder %s20, 0
      %p83 = por %p81, %p82
      %p84 = scmp.ne.s32.totalorder %s72, %s73
      %p85 = scmp.eq.s32.totalorder %s21, 1
      %p86 = por %p84, %p85
      %p88 = scmp.ne.s32.totalorder %s73, %s87
      %p89 = scmp.eq.s32.totalorder %s21, 0
      %p90 = por %p88, %p89
      %s92 = sadd.s32 %s91, 1
      %p95 = scmp.eq.s32.totalorder %s15, 1
      %p96 = scmp.ne.s32.totalorder %s91, %s93
      %p97 = scmp.eq.s32.totalorder %s15, 0
      %p98 = por %p96, %p97
      %p99 = scmp.ne.s32.totalorder %s91, %s93
      %p100 = scmp.eq.s32.totalorder %s20, 1
      %p101 = por %p99, %p100
      %p102 = scmp.ne.s32.totalorder %s93, %s94
      %p103 = scmp.eq.s32.totalorder %s20, 0
      %p104 = por %p102, %p103
      %p105 = scmp.ne.s32.totalorder %s93, %s94
      %p106 = scmp.eq.s32.totalorder %s21, 1
      %p107 = por %p105, %p106
      %p109 = scmp.ne.s32.totalorder %s94, %s108
      %p110 = scmp.eq.s32.totalorder %s21, 0
      %p111 = por %p109, %p110
      %s113 = sadd.s32 %s112, 1
      %p116 = scmp.eq.s32.totalorder %s15, 1
      %p117 = scmp.ne.s32.totalorder %s112, %s114
      %p118 = scmp.eq.s32.totalorder %s15, 0
      %p119 = por %p117, %p118
      %p120 = scmp.ne.s32.totalorder %s112, %s114
      %p121 = scmp.eq.s32.totalorder %s20, 1
      %p122 = por %p120, %p121
      %p123 = scmp.ne.s32.totalorder %s114, %s115
      %p124 = scmp.eq.s32.totalorder %s20, 0
      %p125 = por %p123, %p124
      %p126 = scmp.ne.s32.totalorder %s114, %s115
      %p127 = scmp.eq.s32.totalorder %s21, 1
      %p128 = por %p126, %p127
      %p130 = scmp.ne.s32.totalorder %s115, %s129
      %p131 = scmp.eq.s32.totalorder %s21, 0
      %p132 = por %p130, %p131
      %s134 = sadd.s32 %s133, 1
      %p137 = scmp.eq.s32.totalorder %s15, 1
      %p138 = scmp.ne.s32.totalorder %s133, %s135
      %p139 = scmp.eq.s32.totalorder %s15, 0
      %p140 = por %p138, %p139
      %p141 = scmp.ne.s32.totalorder %s133, %s135
      %p142 = scmp.eq.s32.totalorder %s20, 1
      %p143 = por %p141, %p142
      %p144 = scmp.ne.s32.totalorder %s135, %s136
      %p145 = scmp.eq.s32.totalorder %s20, 0
      %p146 = por %p144, %p145
      %p147 = scmp.ne.s32.totalorder %s135, %s136
      %p148 = scmp.eq.s32.totalorder %s21, 1
      %p149 = por %p147, %p148
      %p151 = scmp.ne.s32.totalorder %s136, %s150
      %p152 = scmp.eq.s32.totalorder %s21, 0
      %p153 = por %p151, %p152
      %s154 = ssub.s32 %s15, %s22
      %p155 = scmp.eq.s32.totalorder %s154, 0
      %s157 = sadd.s32 %s156, 1
      %s158 = scalar_select %p155, %s156, %s157
      %p161 = pneg %p155
      %p162 = scmp.eq.s32.totalorder %s15, 1
      %p163 = por %p161, %p162
      %p164 = scmp.ne.s32.totalorder %s156, %s159
      %p165 = scmp.eq.s32.totalorder %s15, 0
      %p166 = por %p164, %p165
      %p167 = scmp.ne.s32.totalorder %s156, %s159
      %p168 = scmp.eq.s32.totalorder %s20, 1
      %p169 = por %p167, %p168
      %p170 = scmp.ne.s32.totalorder %s159, %s160
      %p171 = scmp.eq.s32.totalorder %s20, 0
      %p172 = por %p170, %p171
      %p173 = scmp.ne.s32.totalorder %s159, %s160
      %p174 = scmp.eq.s32.totalorder %s21, 1
      %p175 = por %p173, %p174
      %p177 = scmp.ne.s32.totalorder %s160, %s176
      %p178 = scmp.eq.s32.totalorder %s21, 0
      %p179 = por %p177, %p178
      %p180 = scmp.le.s32.totalorder 1, %s15
      %p181 = scmp.lt.s32.totalorder %s15, 3
      %p182 = pnand %p180, %p181
      %p183 = pneg %p182
      // Predicated region
      $region9: #{tpu_custom_call.1} parent=5 // pred_check
        _
      $region10: #{tpu_custom_call.1} parent=5 // pred_check_branch
        %185 = sbr.rel (%p182) target = $region12
      $region11: #{tpu_custom_call.1} parent=5 // pred_region
        %s186 = ssub.s32 %s15, 1
        // Predicated region
        $region13: #{tpu_custom_call.1} parent=11 // pred_check
          %p187 = pneg %p62
        $region14: #{tpu_custom_call.1} parent=11 // pred_check_branch
          %189 = sbr.rel (%p187) target = $region16
        $region15: #{tpu_custom_call.1} parent=11 // pred_region
          _
        $region16: #{tpu_custom_call.1} parent=11 // pred_fallthru
          _
        // Predicated region
        $region17: #{tpu_custom_call.1} parent=11 // pred_check
          %p190 = pneg %p83
        $region18: #{tpu_custom_call.1} parent=11 // pred_check_branch
          %192 = sbr.rel (%p190) target = $region20
        $region19: #{tpu_custom_call.1} parent=11 // pred_region
          _
        $region20: #{tpu_custom_call.1} parent=11 // pred_fallthru
          _
        // Predicated region
        $region21: #{tpu_custom_call.1} parent=11 // pred_check
          %p193 = pneg %p104
        $region22: #{tpu_custom_call.1} parent=11 // pred_check_branch
          %195 = sbr.rel (%p193) target = $region24
        $region23: #{tpu_custom_call.1} parent=11 // pred_region
          _
        $region24: #{tpu_custom_call.1} parent=11 // pred_fallthru
          _
        // Predicated region
        $region25: #{tpu_custom_call.1} parent=11 // pred_check
          %p196 = pneg %p125
        $region26: #{tpu_custom_call.1} parent=11 // pred_check_branch
          %198 = sbr.rel (%p196) target = $region28
        $region27: #{tpu_custom_call.1} parent=11 // pred_region
          _
        $region28: #{tpu_custom_call.1} parent=11 // pred_fallthru
          _
        // Predicated region
        $region29: #{tpu_custom_call.1} parent=11 // pred_check
          %p199 = pneg %p146
        $region30: #{tpu_custom_call.1} parent=11 // pred_check_branch
          %201 = sbr.rel (%p199) target = $region32
        $region31: #{tpu_custom_call.1} parent=11 // pred_region
          _
        $region32: #{tpu_custom_call.1} parent=11 // pred_fallthru
          _
      $region12: #{tpu_custom_call.1} parent=5 // pred_fallthru
        _
      %p202 = scmp.lt.s32.totalorder %s15, 2
      // Predicated region
      $region33: #{tpu_custom_call.1} parent=5 // pred_check
        %p203 = pneg %p202
      $region34: #{tpu_custom_call.1} parent=5 // pred_check_branch
        %205 = sbr.rel (%p203) target = $region36
      $region35: #{tpu_custom_call.1} parent=5 // pred_region
        // Predicated region
        $region37: #{tpu_custom_call.1} parent=35 // pred_check
          %p206 = pneg %p35
        $region38: #{tpu_custom_call.1} parent=35 // pred_check_branch
          %208 = sbr.rel (%p206) target = $region40
        $region39: #{tpu_custom_call.1} parent=35 // pred_region
          %p209 = scmp.lt.s32.totalorder %s15, 1
          %s210 = scalar_select %p209, %s15, 1
          %s211 = smul.addr %s210, 4
          %s212 = smul.addr %s211, 2
          %s213 = scalar_lea.vmem %s0, %s212
        $region40: #{tpu_custom_call.1} parent=35 // pred_fallthru
          _
      $region36: #{tpu_custom_call.1} parent=5 // pred_fallthru
        _
      %p214 = scmp.le.s32.totalorder 1, %s15
      %p215 = scmp.lt.s32.totalorder %s15, 3
      %p216 = pnand %p214, %p215
      %p217 = pneg %p216
      // Predicated region
      $region41: #{tpu_custom_call.1} parent=5 // pred_check
        _
      $region42: #{tpu_custom_call.1} parent=5 // pred_check_branch
        %219 = sbr.rel (%p216) target = $region44
      $region43: #{tpu_custom_call.1} parent=5 // pred_region
        %s220 = ssub.s32 %s15, 1
        %p221 = scmp.lt.s32.totalorder %s20, 1
        %s222 = scalar_select %p221, %s20, 1
        %s223 = smul.addr %s222, 4
        %s224 = smul.addr %s223, 2
        %s225 = scalar_lea.vmem %s0, %s224
        %p226 = pneg %p41
        %p227 = pneg %p38
        %p228 = pneg %p62
        %p229 = pneg %p59
        %p230 = pneg %p83
        %p231 = pneg %p80
        %p232 = pneg %p104
        %p233 = pneg %p101
        %p234 = pneg %p125
        %p235 = pneg %p122
        %p236 = pneg %p146
        %p237 = pneg %p143
        %p238 = pneg %p172
        %p239 = pneg %p169
        %s240 = sand.u32 %s159, 1
        %s241 = scalar_lea.sflag [#allocation5], %s240
        %s242 = sand.u32 %s159, 1
        %s243 = smul.addr %s242, 24
        %s244 = scalar_lea.vmem [#allocation4], %s243
        %p245 = scmp.lt.s32.totalorder %s20, 1
        %s246 = scalar_select %p245, %s20, 1
        %s247 = smul.addr %s246, 4
        %s248 = smul.addr %s247, 2
        %s249 = scalar_lea.vmem %s0, %s248
        %v251 = vld [vmem:[%s5] sm:$0x7]
        %v252 = vld [vmem:[%s3] sm:$0xff]
        %v253 = vld [vmem:[%s4] sm:$0xff]
        %vm254 = vcmask 191488
        %255 = vst.msk [vmem:[#allocation2] sm:$0xf] %vm254, 0
        %vm256 = vcmask 388288
        %257 = vst.msk [vmem:[#allocation2 + $0xc] sm:$0xf] %vm256, 0
        %v258 = vld [vmem:[%s249] sm:$0xff]
        %v260 = vcombine.high %v258, %v258
        %v262 = vunpack.c.l.s4 1983009808
        %v263 = vunpack.c.0.s8 %v262
        %v264 = vlaneseq
        %v265 = vshrl.u32 %v264, 7
        %v266 = vsub.s32 %v263, %v265
        %v267 = vrot.slane %v258, %v266
        %v269 = vunpack.c.l.s4 1983009808
        %v270 = vunpack.c.0.s8 %v269
        %v271 = vlaneseq
        %v272 = vshrl.u32 %v271, 7
        %v273 = vsub.s32 %v270, %v272
        %v274 = vrot.slane %v260, %v273
        %275 = vrot.lane.b32.xlu0 %v267, 123
        %v276 = vpop.permute.xlu0 %275
        %277 = vrot.lane.b32.xlu0 %v274, 123
        %v278 = vpop.permute.xlu0 %277
        %v279 = vrot.slane %v276, 4
        %v280 = vrot.slane %v278, 4
        %vm281 = vcmask 1043456
        %v282 = vsel %vm281, %v279, %v280
        %vm283 = vcmask 1006592
        %v284 = vsel %vm283, %v276, %v282
        %v285 = vsel %vm283, %v278, %v280
        %288 = vst [vmem:[#allocation3] sm:$0x33] %v284
        %289 = vst [vmem:[#allocation3 + $0x8] sm:$0x3] %v285
        %v290 = vld [vmem:[%s249] sm:$0xff]
        %v292 = vcombine.low %v290, %v290
        %v294 = vunpack.c.l.s4 1983009808
        %v295 = vunpack.c.0.s8 %v294
        %v296 = vlaneseq
        %v297 = vshrl.u32 %v296, 7
        %v298 = vsub.s32 %v295, %v297
        %v299 = vrot.slane %v292, %v298
        %v301 = vunpack.c.l.s4 1983009808
        %v302 = vunpack.c.0.s8 %v301
        %v303 = vlaneseq
        %v304 = vshrl.u32 %v303, 7
        %v305 = vsub.s32 %v302, %v304
        %v306 = vrot.slane %v290, %v305
        %307 = vrot.lane.b32.xlu0 %v299, 122
        %v308 = vpop.permute.xlu0 %307
        %309 = vrot.lane.b32.xlu0 %v306, 122
        %v310 = vpop.permute.xlu0 %309
        %v311 = vrot.slane %v308, 4
        %v312 = vrot.slane %v310, 4
        %v313 = vsel %vm281, %v311, %v312
        %vm314 = vcmask 998400
        %v315 = vsel %vm314, %v308, %v313
        %v316 = vsel %vm314, %v310, %v312
        %319 = vst [vmem:[#allocation3] sm:$0xcc] %v315
        %320 = vst [vmem:[#allocation3 + $0x8] sm:$0xc] %v316
        %v321 = vld [vmem:[%s249] sm:$0xff]
        %v323 = vcombine.high %v321, %v321
        %v325 = vunpack.c.l.s4 1983009808
        %v326 = vunpack.c.0.s8 %v325
        %v327 = vlaneseq
        %v328 = vshrl.u32 %v327, 7
        %v329 = vsub.s32 %v326, %v328
        %v330 = vrot.slane %v321, %v329
        %v332 = vunpack.c.l.s4 1983009808
        %v333 = vunpack.c.0.s8 %v332
        %v334 = vlaneseq
        %v335 = vshrl.u32 %v334, 7
        %v336 = vsub.s32 %v333, %v335
        %v337 = vrot.slane %v323, %v336
        %338 = vrot.lane.b32.xlu0 %v330, 121
        %v339 = vpop.permute.xlu0 %338
        %340 = vrot.lane.b32.xlu0 %v337, 121
        %v341 = vpop.permute.xlu0 %340
        %v342 = vrot.slane %v339, 4
        %v343 = vrot.slane %v341, 4
        %v344 = vsel %vm281, %v342, %v343
        %vm345 = vcmask 990208
        %v346 = vsel %vm345, %v339, %v344
        %v347 = vsel %vm345, %v341, %v343
        %350 = vst [vmem:[#allocation3 + $0xc] sm:$0x33] %v346
        %351 = vst [vmem:[#allocation3 + $0x14] sm:$0x3] %v347
        %v352 = vld [vmem:[%s249] sm:$0xff]
        %v354 = vcombine.low %v352, %v352
        %v356 = vunpack.c.l.s4 1983009808
        %v357 = vunpack.c.0.s8 %v356
        %v358 = vlaneseq
        %v359 = vshrl.u32 %v358, 7
        %v360 = vsub.s32 %v357, %v359
        %v361 = vrot.slane %v354, %v360
        %v363 = vunpack.c.l.s4 1983009808
        %v364 = vunpack.c.0.s8 %v363
        %v365 = vlaneseq
        %v366 = vshrl.u32 %v365, 7
        %v367 = vsub.s32 %v364, %v366
        %v368 = vrot.slane %v352, %v367
        %369 = vrot.lane.b32.xlu0 %v361, 105
        %v370 = vpop.permute.xlu0 %369
        %371 = vrot.lane.b32.xlu0 %v368, 105
        %v372 = vpop.permute.xlu0 %371
        %v373 = vrot.slane %v370, 4
        %v374 = vrot.slane %v372, 4
        %v375 = vsel %vm281, %v373, %v374
        %vm376 = vcmask 859136
        %v377 = vsel %vm376, %v370, %v375
        %v378 = vsel %vm376, %v372, %v374
        %381 = vst [vmem:[#allocation3 + $0xc] sm:$0xcc] %v377
        %382 = vst [vmem:[#allocation3 + $0x14] sm:$0xc] %v378
        %v383 = vld [vmem:[%s249] sm:$0xff]
        %v385 = vcombine.high %v383, %v383
        %v387 = vunpack.c.l.s4 1983009808
        %v388 = vunpack.c.0.s8 %v387
        %v389 = vlaneseq
        %v390 = vshrl.u32 %v389, 7
        %v391 = vsub.s32 %v388, %v390
        %v392 = vrot.slane %v383, %v391
        %v394 = vunpack.c.l.s4 1983009808
        %v395 = vunpack.c.0.s8 %v394
        %v396 = vlaneseq
        %v397 = vshrl.u32 %v396, 7
        %v398 = vsub.s32 %v395, %v397
        %v399 = vrot.slane %v385, %v398
        %400 = vrot.lane.b32.xlu0 %v392, 104
        %v401 = vpop.permute.xlu0 %400
        %402 = vrot.lane.b32.xlu0 %v399, 104
        %v403 = vpop.permute.xlu0 %402
        %v404 = vrot.slane %v401, 4
        %v405 = vrot.slane %v403, 4
        %v406 = vsel %vm281, %v404, %v405
        %vm407 = vcmask 850944
        %v408 = vsel %vm407, %v401, %v406
        %v409 = vsel %vm407, %v403, %v405
        %412 = vst [vmem:[#allocation3 + $0x18] sm:$0x33] %v408
        %413 = vst [vmem:[#allocation3 + $0x20] sm:$0x3] %v409
        %v414 = vld [vmem:[%s249] sm:$0xff]
        %v416 = vcombine.low %v414, %v414
        %v418 = vunpack.c.l.s4 1983009808
        %v419 = vunpack.c.0.s8 %v418
        %v420 = vlaneseq
        %v421 = vshrl.u32 %v420, 7
        %v422 = vsub.s32 %v419, %v421
        %v423 = vrot.slane %v416, %v422
        %v425 = vunpack.c.l.s4 1983009808
        %v426 = vunpack.c.0.s8 %v425
        %v427 = vlaneseq
        %v428 = vshrl.u32 %v427, 7
        %v429 = vsub.s32 %v426, %v428
        %v430 = vrot.slane %v414, %v429
        %431 = vrot.lane.b32.xlu0 %v423, 103
        %v432 = vpop.permute.xlu0 %431
        %433 = vrot.lane.b32.xlu0 %v430, 103
        %v434 = vpop.permute.xlu0 %433
        %v435 = vrot.slane %v432, 4
        %v436 = vrot.slane %v434, 4
        %v437 = vsel %vm281, %v435, %v436
        %vm438 = vcmask 842752
        %v439 = vsel %vm438, %v432, %v437
        %v440 = vsel %vm438, %v434, %v436
        %443 = vst [vmem:[#allocation3 + $0x18] sm:$0xcc] %v439
        %444 = vst [vmem:[#allocation3 + $0x20] sm:$0xc] %v440
        %v445 = vld [vmem:[%s249] sm:$0xff]
        %v447 = vcombine.high %v445, %v445
        %v449 = vunpack.c.l.s4 1983009808
        %v450 = vunpack.c.0.s8 %v449
        %v451 = vlaneseq
        %v452 = vshrl.u32 %v451, 7
        %v453 = vsub.s32 %v450, %v452
        %v454 = vrot.slane %v445, %v453
        %v456 = vunpack.c.l.s4 1983009808
        %v457 = vunpack.c.0.s8 %v456
        %v458 = vlaneseq
        %v459 = vshrl.u32 %v458, 7
        %v460 = vsub.s32 %v457, %v459
        %v461 = vrot.slane %v447, %v460
        %462 = vrot.lane.b32.xlu0 %v454, 87
        %v463 = vpop.permute.xlu0 %462
        %464 = vrot.lane.b32.xlu0 %v461, 87
        %v465 = vpop.permute.xlu0 %464
        %v466 = vrot.slane %v463, 4
        %v467 = vrot.slane %v465, 4
        %v468 = vsel %vm281, %v466, %v467
        %vm469 = vcmask 711680
        %v470 = vsel %vm469, %v463, %v468
        %v471 = vsel %vm469, %v465, %v467
        %474 = vst [vmem:[#allocation3 + $0x24] sm:$0x33] %v470
        %475 = vst [vmem:[#allocation3 + $0x2c] sm:$0x3] %v471
        %v476 = vld [vmem:[%s249] sm:$0xff]
        %v478 = vcombine.low %v476, %v476
        %v480 = vunpack.c.l.s4 1983009808
        %v481 = vunpack.c.0.s8 %v480
        %v482 = vlaneseq
        %v483 = vshrl.u32 %v482, 7
        %v484 = vsub.s32 %v481, %v483
        %v485 = vrot.slane %v478, %v484
        %v487 = vunpack.c.l.s4 1983009808
        %v488 = vunpack.c.0.s8 %v487
        %v489 = vlaneseq
        %v490 = vshrl.u32 %v489, 7
        %v491 = vsub.s32 %v488, %v490
        %v492 = vrot.slane %v476, %v491
        %493 = vrot.lane.b32.xlu0 %v485, 86
        %v494 = vpop.permute.xlu0 %493
        %495 = vrot.lane.b32.xlu0 %v492, 86
        %v496 = vpop.permute.xlu0 %495
        %v497 = vrot.slane %v494, 4
        %v498 = vrot.slane %v496, 4
        %v499 = vsel %vm281, %v497, %v498
        %vm500 = vcmask 703488
        %v501 = vsel %vm500, %v494, %v499
        %v502 = vsel %vm500, %v496, %v498
        %505 = vst [vmem:[#allocation3 + $0x24] sm:$0xcc] %v501
        %506 = vst [vmem:[#allocation3 + $0x2c] sm:$0xc] %v502
        %v507 = vld [vmem:[%s249] sm:$0xff]
        %v509 = vcombine.high %v507, %v507
        %v511 = vunpack.c.l.s4 1983009808
        %v512 = vunpack.c.0.s8 %v511
        %v513 = vlaneseq
        %v514 = vshrl.u32 %v513, 7
        %v515 = vsub.s32 %v512, %v514
        %v516 = vrot.slane %v507, %v515
        %v518 = vunpack.c.l.s4 1983009808
        %v519 = vunpack.c.0.s8 %v518
        %v520 = vlaneseq
        %v521 = vshrl.u32 %v520, 7
        %v522 = vsub.s32 %v519, %v521
        %v523 = vrot.slane %v509, %v522
        %524 = vrot.lane.b32.xlu0 %v516, 85
        %v525 = vpop.permute.xlu0 %524
        %526 = vrot.lane.b32.xlu0 %v523, 85
        %v527 = vpop.permute.xlu0 %526
        %v528 = vrot.slane %v525, 4
        %v529 = vrot.slane %v527, 4
        %v530 = vsel %vm281, %v528, %v529
        %vm531 = vcmask 695296
        %v532 = vsel %vm531, %v525, %v530
        %v533 = vsel %vm531, %v527, %v529
        %536 = vst [vmem:[#allocation3 + $0x30] sm:$0x33] %v532
        %537 = vst [vmem:[#allocation3 + $0x38] sm:$0x3] %v533
        %v538 = vld [vmem:[%s1] sm:$0xf]
        %v539 = vld [vmem:[#allocation3] sm:$0xff]
        %v540 = vld [vmem:[#allocation3 + $0x8] sm:$0xf]
        %v541 = vld [vmem:[#allocation3 + $0xc] sm:$0xff]
        %v542 = vld [vmem:[#allocation3 + $0x14] sm:$0xf]
        %v543 = vld [vmem:[#allocation3 + $0x18] sm:$0xff]
        %v544 = vld [vmem:[#allocation3 + $0x20] sm:$0xf]
        %v545 = vld [vmem:[#allocation3 + $0x24] sm:$0xff]
        %v546 = vld [vmem:[#allocation3 + $0x2c] sm:$0xf]
        %v547 = vld [vmem:[#allocation3 + $0x30] sm:$0x33]
        %v548 = vld [vmem:[#allocation3 + $0x38] sm:$0x3]
        %v559 = vunpack.c.l.b16 %v539
        %v560 = vunpack.c.h.b16 %v539
        %v561 = vunpack.c.l.b16 %v540
        %v562 = vunpack.c.l.b16 %v541
        %v563 = vunpack.c.h.b16 %v541
        %v564 = vunpack.c.l.b16 %v542
        %v565 = vunpack.c.l.b16 %v543
        %v566 = vunpack.c.h.b16 %v543
        %v567 = vunpack.c.l.b16 %v544
        %v568 = vunpack.c.l.b16 %v545
        %v569 = vunpack.c.h.b16 %v545
        %v570 = vunpack.c.l.b16 %v546
        %v571 = vunpack.c.l.b16 %v547
        %v572 = vunpack.c.h.b16 %v547
        %v573 = vunpack.c.l.b16 %v548
        %v574 = vpack.c.b16 %v562, %v559
        %v575 = vpack.c.b16 %v563, %v560
        %v576 = vpack.c.b16 %v564, %v561
        %v577 = vpack.c.b16 %v568, %v565
        %v578 = vpack.c.b16 %v569, %v566
        %v579 = vpack.c.b16 %v570, %v567
        %v580 = vpack.c.b16 %v571, %v571
        %v581 = vpack.c.b16 %v572, %v572
        %v582 = vpack.c.b16 %v573, %v573
        %vm589 = vcmask 293888
        %v591 = vsel %vm589, %v538, 0
        %vm593 = vcmask 1041408
        %v595 = vsel %vm593, %v580, 0
        %v598 = vsel %vm593, %v581, 0
        %v601 = vsel %vm593, %v582, 0
        %603 = vmatprep.subr.bf16.mxu0 %v575
        %604 = vmatpush1.bf16.msra.mxu0 %v574
        %605 = vmatprep.subr.bf16.mxu0 %v578
        %606 = vmatpush1.bf16.msra.mxu0 %v577
        %607 = vmatprep.subr.bf16.mxu0 %v598
        %608 = vmatpush1.bf16.msra.mxu0 %v595
        %609 = vmatprep.subr.bf16.mxu0 0
        %610 = vmatpush1.bf16.msra.mxu0 0
        %611 = vmatprep.subr.bf16.mxu0 0
        %612 = vmatpush1.bf16.msra.mxu0 0
        %613 = vmatprep.subr.bf16.mxu0 0
        %614 = vmatpush1.bf16.msra.mxu0 0
        %615 = vmatprep.subr.bf16.mxu0 0
        %616 = vmatpush1.bf16.msra.mxu0 0
        %617 = vmatprep.subr.bf16.mxu0 0
        %618 = vmatpush1.bf16.msra.mxu0 0
        %619 = vmatprep.subr.bf16.mxu0 0
        %620 = vmatpush1.bf16.msra.mxu0 0
        %621 = vmatprep.subr.bf16.mxu0 0
        %622 = vmatpush1.bf16.msra.mxu0 0
        %623 = vmatprep.subr.bf16.mxu0 0
        %624 = vmatpush1.bf16.msra.mxu0 0
        %625 = vmatprep.subr.bf16.mxu0 0
        %626 = vmatpush1.bf16.msra.mxu0 0
        %627 = vmatprep.subr.bf16.mxu0 0
        %628 = vmatpush1.bf16.msra.mxu0 0
        %629 = vmatprep.subr.bf16.mxu0 0
        %630 = vmatpush1.bf16.msra.mxu0 0
        %631 = vmatprep.subr.bf16.mxu0 0
        %632 = vmatpush1.bf16.msra.mxu0 0
        %633 = vmatprep.subr.bf16.mxu0 0
        %634 = vmatpush1.bf16.msra.mxu0 0
        %635 = vmatprep.mubr.bf16.mxu0 0
        %636 = vmatmul.mubr.bf16.gmra.mrb[0].mxu0 %v591
        %v637 = vpop.f32.mrb[0].mxu0
        %v638 = vadd.f32 0.0, %v637
        %v639 = vpop.f32.mrb[0].mxu0
        %v640 = vadd.f32 0.0, %v639
        %v641 = vpop.f32.mrb[0].mxu0
        %v642 = vpop.f32.mrb[0].mxu0
        %643 = vdwg.mxu0
        %644 = vmatprep.subr.bf16.mxu0 0
        %645 = vmatpush1.bf16.msra.mxu0 %v576
        %646 = vmatprep.subr.bf16.mxu0 0
        %647 = vmatpush1.bf16.msra.mxu0 %v579
        %648 = vmatprep.subr.bf16.mxu0 0
        %649 = vmatpush1.bf16.msra.mxu0 %v601
        %650 = vmatprep.subr.bf16.mxu0 0
        %651 = vmatpush1.bf16.msra.mxu0 0
        %652 = vmatprep.subr.bf16.mxu0 0
        %653 = vmatpush1.bf16.msra.mxu0 0
        %654 = vmatprep.subr.bf16.mxu0 0
        %655 = vmatpush1.bf16.msra.mxu0 0
        %656 = vmatprep.subr.bf16.mxu0 0
        %657 = vmatpush1.bf16.msra.mxu0 0
        %658 = vmatprep.subr.bf16.mxu0 0
        %659 = vmatpush1.bf16.msra.mxu0 0
        %660 = vmatprep.subr.bf16.mxu0 0
        %661 = vmatpush1.bf16.msra.mxu0 0
        %662 = vmatprep.subr.bf16.mxu0 0
        %663 = vmatpush1.bf16.msra.mxu0 0
        %664 = vmatprep.subr.bf16.mxu0 0
        %665 = vmatpush1.bf16.msra.mxu0 0
        %666 = vmatprep.subr.bf16.mxu0 0
        %667 = vmatpush1.bf16.msra.mxu0 0
        %668 = vmatprep.subr.bf16.mxu0 0
        %669 = vmatpush1.bf16.msra.mxu0 0
        %670 = vmatprep.subr.bf16.mxu0 0
        %671 = vmatpush1.bf16.msra.mxu0 0
        %672 = vmatprep.subr.bf16.mxu0 0
        %673 = vmatpush1.bf16.msra.mxu0 0
        %674 = vmatprep.subr.bf16.mxu0 0
        %675 = vmatpush1.bf16.msra.mxu0 0
        %676 = vmatprep.mubr.bf16.mxu0 0
        %677 = vmatmul.mubr.bf16.gmra.mrb[0].mxu0 %v591
        %v678 = vpop.f32.mrb[0].mxu0
        %v679 = vadd.f32 0.0, %v678
        %v680 = vpop.f32.mrb[0].mxu0
        %v681 = vpop.f32.mrb[0].mxu0
        %v682 = vpop.f32.mrb[0].mxu0
        %683 = vdwg.mxu0
        %v685 = vlaneseq
        %v686 = vshrl.u32 %v685, 7
        %v687 = vsub.s32 0, %v686
        %v688 = vrot.slane %v251, %v687
        %v689 = vlaneseq
        %v690 = vshrl.u32 %v689, 7
        %v691 = vsub.s32 1, %v690
        %v692 = vrot.slane %v251, %v691
        %v693 = vlaneseq
        %v694 = vshrl.u32 %v693, 7
        %v695 = vsub.s32 2, %v694
        %v696 = vrot.slane %v251, %v695
        %v700 = vmul.f32 %v638, %v688
        %v701 = vmul.f32 %v640, %v692
        %v702 = vmul.f32 %v679, %v696
        %v703 = vadd.f32 %v700, %v701
        %v704 = vadd.f32 %v703, %v702
        %705 = vadd.xlane.f32.xlu0 %v704
        %v706 = vpop.xlane.xlu0 %705
        %v707 = vrot.slane %v706, 4
        %v708 = vadd.f32 %v706, %v707
        %v709 = vrot.slane %v708, 2
        %v710 = vadd.f32 %v708, %v709
        %v711 = vrot.slane %v710, 1
        %v712 = vadd.f32 %v710, %v711
        %s713 = vtos %v712
        %v714 = vmul.f32 %v638, %v700
        %v715 = vmul.f32 %v640, %v701
        %v716 = vmul.f32 %v679, %v702
        %v717 = vadd.f32 %v714, %v715
        %v718 = vadd.f32 %v717, %v716
        %719 = vadd.xlane.f32.xlu0 %v718
        %v720 = vpop.xlane.xlu0 %719
        %v721 = vrot.slane %v720, 4
        %v722 = vadd.f32 %v720, %v721
        %v723 = vrot.slane %v722, 2
        %v724 = vadd.f32 %v722, %v723
        %v725 = vrot.slane %v724, 1
        %v726 = vadd.f32 %v724, %v725
        %s727 = vtos %v726
        %v728 = vrcp.pop 2048.0
        %s729 = vtos %v728
        %s730 = smul.f32 %s713, %s729
        %v731 = vrcp.pop 2048.0
        %s732 = vtos %v731
        %s733 = smul.f32 %s727, %s732
        %s734 = smul.f32 %s730, %s730
        %s735 = ssub.f32 %s733, %s734
        %s736 = smax.f32 %s735, 0.0
        %s737 = sadd.f32 %s736, 1e-05
        %v738 = vstv %s737
        %v739 = vrsqrt.pop %v738
        %s740 = vtos %v739
        %v741 = vstv %s740
        %v742 = vmul.f32 %v741, %v252
        %v743 = vstv %s730
        %v744 = vmul.f32 %v743, %v742
        %v745 = vsub.f32 %v253, %v744
        %747 = vset.pattern.permute.xlu0 0
        %748 = vperm.xlu0 %747, %v742
        %v749 = vpop.permute.xlu0 %748
        %v751 = vmul.f32 %v638, %v749
        %v752 = vmul.f32 %v640, %v749
        %v753 = vmul.f32 %v679, %v749
        %755 = vset.pattern.permute.xlu0 0
        %756 = vperm.xlu0 %755, %v745
        %v757 = vpop.permute.xlu0 %756
        %v759 = vadd.f32 %v751, %v757
        %v760 = vadd.f32 %v752, %v757
        %v761 = vadd.f32 %v753, %v757
        %v762 = vmul.f32 %v759, %v759
        %v763 = vmul.f32 %v760, %v760
        %v764 = vmul.f32 %v761, %v761
        %v765 = vmul.f32 %v759, %v762
        %v766 = vmul.f32 %v760, %v763
        %v767 = vmul.f32 %v761, %v764
        %v768 = vmul.f32 %v765, 0.044715
        %v769 = vmul.f32 %v766, 0.044715
        %v770 = vmul.f32 %v767, 0.044715
        %v771 = vadd.f32 %v759, %v768
        %v772 = vadd.f32 %v760, %v769
        %v773 = vadd.f32 %v761, %v770
        %v774 = vmul.f32 %v771, 0.7978846
        %v775 = vmul.f32 %v772, 0.7978846
        %v776 = vmul.f32 %v773, 0.7978846
        %v777 = vtanh.pop %v774
        %v778 = vtanh.pop %v775
        %v779 = vtanh.pop %v776
        %v780 = vadd.f32 %v777, 1.0
        %v781 = vadd.f32 %v778, 1.0
        %v782 = vadd.f32 %v779, 1.0
        %v783 = vmul.f32 %v780, 0.5
        %v784 = vmul.f32 %v781, 0.5
        %v785 = vmul.f32 %v782, 0.5
        %v786 = vmul.f32 %v759, %v783
        %v787 = vmul.f32 %v760, %v784
        %v788 = vmul.f32 %v761, %v785
        %v789 = vmul.f32 %v786, %v688
        %v790 = vmul.f32 %v787, %v692
        %v791 = vmul.f32 %v788, %v696
        %v792 = vpack.c.bf16 %v789, %v789
        %v793 = vpack.c.bf16 %v790, %v790
        %v794 = vpack.c.bf16 %v791, %v791
        %v798 = vunpack.c.l.b16 %v792
        %v799 = vunpack.c.l.b16 %v793
        %v800 = vunpack.c.l.b16 %v794
        %v801 = vpack.c.b16 %v799, %v798
        %v802 = vpack.c.b16 %v800, %v800
        %803 = vrot.lane.b32.xlu0 %v801, 24
        %v804 = vpop.permute.xlu0 %803
        %805 = vrot.lane.b32.xlu0 %v802, 24
        %v806 = vpop.permute.xlu0 %805
        %v807 = vrot.slane %v804, 4
        %v808 = vrot.slane %v806, 4
        %vm809 = vcmask 195584
        %v810 = vsel %vm809, %v807, %v804
        %v811 = vsel %vm281, %v807, %v808
        %v812 = vsel %vm809, %v811, %v806
        %vm815 = vcmask 1043648
        %vm816 = vcmask 1047556
        %vm817 = vmor %vm816, %vm815
        %818 = vst.msk [vmem:[#allocation2] sm:$0xff] %vm817, %v810
        %vm819 = vcmask 1043456
        %vm820 = vcmask 195588
        %vm821 = vmor %vm820, %vm819
        %822 = vst.msk [vmem:[#allocation2 + $0x8] sm:$0xff] %vm821, %v812
        %v823 = vld [vmem:[#allocation2] sm:$0xff]
        %v824 = vld [vmem:[#allocation2 + $0x8] sm:$0xff]
        %827 = vrot.lane.b32.xlu0 %v823, 123
        %v828 = vpop.permute.xlu0 %827
        %829 = vrot.lane.b32.xlu0 %v824, 123
        %v830 = vpop.permute.xlu0 %829
        %v831 = vrot.slane %v828, 4
        %v832 = vrot.slane %v830, 4
        %v833 = vsel %vm281, %v831, %v832
        %v834 = vsel %vm283, %v828, %v833
        %v835 = vsel %vm283, %v830, %v832
        %838 = vst [vmem:[#allocation3] sm:$0xff] %v834
        %839 = vst [vmem:[#allocation3 + $0x8] sm:$0xf] %v835
        %v840 = vld [vmem:[#allocation2] sm:$0xff]
        %v841 = vld [vmem:[#allocation2 + $0x8] sm:$0xff]
        %844 = vrot.lane.b32.xlu0 %v840, 122
        %v845 = vpop.permute.xlu0 %844
        %846 = vrot.lane.b32.xlu0 %v841, 122
        %v847 = vpop.permute.xlu0 %846
        %v848 = vrot.slane %v845, 4
        %v849 = vrot.slane %v847, 4
        %v850 = vsel %vm281, %v848, %v849
        %v851 = vsel %vm314, %v845, %v850
        %v852 = vsel %vm314, %v847, %v849
        %855 = vst [vmem:[#allocation3 + $0xc] sm:$0xff] %v851
        %856 = vst [vmem:[#allocation3 + $0x14] sm:$0xf] %v852
        %v857 = vld [vmem:[#allocation2] sm:$0xff]
        %v858 = vld [vmem:[#allocation2 + $0x8] sm:$0xff]
        %861 = vrot.lane.b32.xlu0 %v857, 121
        %v862 = vpop.permute.xlu0 %861
        %863 = vrot.lane.b32.xlu0 %v858, 121
        %v864 = vpop.permute.xlu0 %863
        %v865 = vrot.slane %v862, 4
        %v866 = vrot.slane %v864, 4
        %v867 = vsel %vm281, %v865, %v866
        %v868 = vsel %vm345, %v862, %v867
        %v869 = vsel %vm345, %v864, %v866
        %872 = vst [vmem:[#allocation3 + $0x18] sm:$0xff] %v868
        %873 = vst [vmem:[#allocation3 + $0x20] sm:$0xf] %v869
        %v874 = vld [vmem:[#allocation2] sm:$0xff]
        %v875 = vld [vmem:[#allocation2 + $0x8] sm:$0xff]
        %878 = vrot.lane.b32.xlu0 %v874, 105
        %v879 = vpop.permute.xlu0 %878
        %880 = vrot.lane.b32.xlu0 %v875, 105
        %v881 = vpop.permute.xlu0 %880
        %v882 = vrot.slane %v879, 4
        %v883 = vrot.slane %v881, 4
        %v884 = vsel %vm281, %v882, %v883
        %v885 = vsel %vm376, %v879, %v884
        %v886 = vsel %vm376, %v881, %v883
        %889 = vst [vmem:[#allocation3 + $0x24] sm:$0xff] %v885
        %890 = vst [vmem:[#allocation3 + $0x2c] sm:$0xf] %v886
        %v891 = vld [vmem:[#allocation2] sm:$0xff]
        %v892 = vld [vmem:[#allocation2 + $0x8] sm:$0xff]
        %895 = vrot.lane.b32.xlu0 %v891, 104
        %v896 = vpop.permute.xlu0 %895
        %897 = vrot.lane.b32.xlu0 %v892, 104
        %v898 = vpop.permute.xlu0 %897
        %v899 = vrot.slane %v896, 4
        %v900 = vrot.slane %v898, 4
        %v901 = vsel %vm281, %v899, %v900
        %v902 = vsel %vm407, %v896, %v901
        %v903 = vsel %vm407, %v898, %v900
        %906 = vst [vmem:[#allocation3 + $0x30] sm:$0xff] %v902
        %907 = vst [vmem:[#allocation3 + $0x38] sm:$0xf] %v903
        %v908 = vld [vmem:[#allocation2] sm:$0xff]
        %v909 = vld [vmem:[#allocation2 + $0x8] sm:$0xff]
        %912 = vrot.lane.b32.xlu0 %v908, 103
        %v913 = vpop.permute.xlu0 %912
        %914 = vrot.lane.b32.xlu0 %v909, 103
        %v915 = vpop.permute.xlu0 %914
        %v916 = vrot.slane %v913, 4
        %v917 = vrot.slane %v915, 4
        %v918 = vsel %vm281, %v916, %v917
        %v919 = vsel %vm438, %v913, %v918
        %v920 = vsel %vm438, %v915, %v917
        %923 = vst [vmem:[#allocation3 + $0x3c] sm:$0xff] %v919
        %924 = vst [vmem:[#allocation3 + $0x44] sm:$0xf] %v920
        %v925 = vld [vmem:[#allocation2] sm:$0xff]
        %v926 = vld [vmem:[#allocation2 + $0x8] sm:$0xff]
        %929 = vrot.lane.b32.xlu0 %v925, 87
        %v930 = vpop.permute.xlu0 %929
        %931 = vrot.lane.b32.xlu0 %v926, 87
        %v932 = vpop.permute.xlu0 %931
        %v933 = vrot.slane %v930, 4
        %v934 = vrot.slane %v932, 4
        %v935 = vsel %vm281, %v933, %v934
        %v936 = vsel %vm469, %v930, %v935
        %v937 = vsel %vm469, %v932, %v934
        %940 = vst [vmem:[#allocation3 + $0x48] sm:$0xff] %v936
        %941 = vst [vmem:[#allocation3 + $0x50] sm:$0xf] %v937
        %v942 = vld [vmem:[#allocation2] sm:$0xff]
        %v943 = vld [vmem:[#allocation2 + $0x8] sm:$0xff]
        %946 = vrot.lane.b32.xlu0 %v942, 86
        %v947 = vpop.permute.xlu0 %946
        %948 = vrot.lane.b32.xlu0 %v943, 86
        %v949 = vpop.permute.xlu0 %948
        %v950 = vrot.slane %v947, 4
        %v951 = vrot.slane %v949, 4
        %v952 = vsel %vm281, %v950, %v951
        %v953 = vsel %vm500, %v947, %v952
        %v954 = vsel %vm500, %v949, %v951
        %957 = vst [vmem:[#allocation3 + $0x54] sm:$0xff] %v953
        %958 = vst [vmem:[#allocation3 + $0x5c] sm:$0xf] %v954
        %v959 = vld [vmem:[#allocation2] sm:$0xff]
        %v960 = vld [vmem:[#allocation2 + $0x8] sm:$0xff]
        %963 = vrot.lane.b32.xlu0 %v959, 85
        %v964 = vpop.permute.xlu0 %963
        %965 = vrot.lane.b32.xlu0 %v960, 85
        %v966 = vpop.permute.xlu0 %965
        %v967 = vrot.slane %v964, 4
        %v968 = vrot.slane %v966, 4
        %v969 = vsel %vm281, %v967, %v968
        %v970 = vsel %vm531, %v964, %v969
        %v971 = vsel %vm531, %v966, %v968
        %974 = vst [vmem:[#allocation3 + $0x60] sm:$0xff] %v970
        %975 = vst [vmem:[#allocation3 + $0x68] sm:$0xf] %v971
        %v976 = vld [vmem:[%s2] sm:$0xf]
        %v977 = vld [vmem:[#allocation3] sm:$0xff]
        %v978 = vld [vmem:[#allocation3 + $0x8] sm:$0xf]
        %v979 = vld [vmem:[#allocation3 + $0xc] sm:$0xff]
        %v980 = vld [vmem:[#allocation3 + $0x14] sm:$0xf]
        %v981 = vld [vmem:[#allocation3 + $0x18] sm:$0xff]
        %v982 = vld [vmem:[#allocation3 + $0x20] sm:$0xf]
        %v983 = vld [vmem:[#allocation3 + $0x24] sm:$0xff]
        %v984 = vld [vmem:[#allocation3 + $0x2c] sm:$0xf]
        %v985 = vld [vmem:[#allocation3 + $0x30] sm:$0xff]
        %v986 = vld [vmem:[#allocation3 + $0x38] sm:$0xf]
        %v987 = vld [vmem:[#allocation3 + $0x3c] sm:$0xff]
        %v988 = vld [vmem:[#allocation3 + $0x44] sm:$0xf]
        %v989 = vld [vmem:[#allocation3 + $0x48] sm:$0xff]
        %v990 = vld [vmem:[#allocation3 + $0x50] sm:$0xf]
        %v991 = vld [vmem:[#allocation3 + $0x54] sm:$0xff]
        %v992 = vld [vmem:[#allocation3 + $0x5c] sm:$0xf]
        %v993 = vld [vmem:[#allocation3 + $0x60] sm:$0xff]
        %v994 = vld [vmem:[#allocation3 + $0x68] sm:$0xf]
        %v1013 = vunpack.c.l.b16 %v977
        %v1014 = vunpack.c.h.b16 %v977
        %v1015 = vunpack.c.l.b16 %v978
        %v1016 = vunpack.c.l.b16 %v979
        %v1017 = vunpack.c.h.b16 %v979
        %v1018 = vunpack.c.l.b16 %v980
        %v1019 = vunpack.c.l.b16 %v981
        %v1020 = vunpack.c.h.b16 %v981
        %v1021 = vunpack.c.l.b16 %v982
        %v1022 = vunpack.c.l.b16 %v983
        %v1023 = vunpack.c.h.b16 %v983
        %v1024 = vunpack.c.l.b16 %v984
        %v1025 = vunpack.c.l.b16 %v985
        %v1026 = vunpack.c.h.b16 %v985
        %v1027 = vunpack.c.l.b16 %v986
        %v1028 = vunpack.c.l.b16 %v987
        %v1029 = vunpack.c.h.b16 %v987
        %v1030 = vunpack.c.l.b16 %v988
        %v1031 = vunpack.c.l.b16 %v989
        %v1032 = vunpack.c.h.b16 %v989
        %v1033 = vunpack.c.l.b16 %v990
        %v1034 = vunpack.c.l.b16 %v991
        %v1035 = vunpack.c.h.b16 %v991
        %v1036 = vunpack.c.l.b16 %v992
        %v1037 = vunpack.c.l.b16 %v993
        %v1038 = vunpack.c.h.b16 %v993
        %v1039 = vunpack.c.l.b16 %v994
        %v1040 = vpack.c.b16 %v1016, %v1013
        %v1041 = vpack.c.b16 %v1017, %v1014
        %v1042 = vpack.c.b16 %v1018, %v1015
        %v1043 = vpack.c.b16 %v1022, %v1019
        %v1044 = vpack.c.b16 %v1023, %v1020
        %v1045 = vpack.c.b16 %v1024, %v1021
        %v1046 = vpack.c.b16 %v1028, %v1025
        %v1047 = vpack.c.b16 %v1029, %v1026
        %v1048 = vpack.c.b16 %v1030, %v1027
        %v1049 = vpack.c.b16 %v1034, %v1031
        %v1050 = vpack.c.b16 %v1035, %v1032
        %v1051 = vpack.c.b16 %v1036, %v1033
        %v1052 = vpack.c.b16 %v1037, %v1037
        %v1053 = vpack.c.b16 %v1038, %v1038
        %v1054 = vpack.c.b16 %v1039, %v1039
        %vm1067 = vcmask 588800
        %v1069 = vsel %vm1067, %v976, 0
        %v1072 = vsel %vm819, %v1052, 0
        %v1075 = vsel %vm819, %v1053, 0
        %v1078 = vsel %vm819, %v1054, 0
        %1080 = vmatprep.subr.bf16.mxu0 %v1041
        %1081 = vmatpush1.bf16.msra.mxu0 %v1040
        %1082 = vmatprep.subr.bf16.mxu0 %v1044
        %1083 = vmatpush1.bf16.msra.mxu0 %v1043
        %1084 = vmatprep.subr.bf16.mxu0 %v1047
        %1085 = vmatpush1.bf16.msra.mxu0 %v1046
        %1086 = vmatprep.subr.bf16.mxu0 %v1050
        %1087 = vmatpush1.bf16.msra.mxu0 %v1049
        %1088 = vmatprep.subr.bf16.mxu0 %v1075
        %1089 = vmatpush1.bf16.msra.mxu0 %v1072
        %1090 = vmatprep.subr.bf16.mxu0 0
        %1091 = vmatpush1.bf16.msra.mxu0 0
        %1092 = vmatprep.subr.bf16.mxu0 0
        %1093 = vmatpush1.bf16.msra.mxu0 0
        %1094 = vmatprep.subr.bf16.mxu0 0
        %1095 = vmatpush1.bf16.msra.mxu0 0
        %1096 = vmatprep.subr.bf16.mxu0 0
        %1097 = vmatpush1.bf16.msra.mxu0 0
        %1098 = vmatprep.subr.bf16.mxu0 0
        %1099 = vmatpush1.bf16.msra.mxu0 0
        %1100 = vmatprep.subr.bf16.mxu0 0
        %1101 = vmatpush1.bf16.msra.mxu0 0
        %1102 = vmatprep.subr.bf16.mxu0 0
        %1103 = vmatpush1.bf16.msra.mxu0 0
        %1104 = vmatprep.subr.bf16.mxu0 0
        %1105 = vmatpush1.bf16.msra.mxu0 0
        %1106 = vmatprep.subr.bf16.mxu0 0
        %1107 = vmatpush1.bf16.msra.mxu0 0
        %1108 = vmatprep.subr.bf16.mxu0 0
        %1109 = vmatpush1.bf16.msra.mxu0 0
        %1110 = vmatprep.subr.bf16.mxu0 0
        %1111 = vmatpush1.bf16.msra.mxu0 0
        %1112 = vmatprep.mubr.bf16.mxu0 0
        %1113 = vmatmul.mubr.bf16.gmra.mrb[0].mxu0 %v1069
        %v1114 = vpop.f32.mrb[0].mxu0
        %v1115 = vadd.f32 0.0, %v1114
        %v1116 = vpop.f32.mrb[0].mxu0
        %v1117 = vadd.f32 0.0, %v1116
        %v1118 = vpop.f32.mrb[0].mxu0
        %v1119 = vpop.f32.mrb[0].mxu0
        %1120 = vdwg.mxu0
        %1121 = vmatprep.subr.bf16.mxu0 0
        %1122 = vmatpush1.bf16.msra.mxu0 %v1042
        %1123 = vmatprep.subr.bf16.mxu0 0
        %1124 = vmatpush1.bf16.msra.mxu0 %v1045
        %1125 = vmatprep.subr.bf16.mxu0 0
        %1126 = vmatpush1.bf16.msra.mxu0 %v1048
        %1127 = vmatprep.subr.bf16.mxu0 0
        %1128 = vmatpush1.bf16.msra.mxu0 %v1051
        %1129 = vmatprep.subr.bf16.mxu0 0
        %1130 = vmatpush1.bf16.msra.mxu0 %v1078
        %1131 = vmatprep.subr.bf16.mxu0 0
        %1132 = vmatpush1.bf16.msra.mxu0 0
        %1133 = vmatprep.subr.bf16.mxu0 0
        %1134 = vmatpush1.bf16.msra.mxu0 0
        %1135 = vmatprep.subr.bf16.mxu0 0
        %1136 = vmatpush1.bf16.msra.mxu0 0
        %1137 = vmatprep.subr.bf16.mxu0 0
        %1138 = vmatpush1.bf16.msra.mxu0 0
        %1139 = vmatprep.subr.bf16.mxu0 0
        %1140 = vmatpush1.bf16.msra.mxu0 0
        %1141 = vmatprep.subr.bf16.mxu0 0
        %1142 = vmatpush1.bf16.msra.mxu0 0
        %1143 = vmatprep.subr.bf16.mxu0 0
        %1144 = vmatpush1.bf16.msra.mxu0 0
        %1145 = vmatprep.subr.bf16.mxu0 0
        %1146 = vmatpush1.bf16.msra.mxu0 0
        %1147 = vmatprep.subr.bf16.mxu0 0
        %1148 = vmatpush1.bf16.msra.mxu0 0
        %1149 = vmatprep.subr.bf16.mxu0 0
        %1150 = vmatpush1.bf16.msra.mxu0 0
        %1151 = vmatprep.subr.bf16.mxu0 0
        %1152 = vmatpush1.bf16.msra.mxu0 0
        %1153 = vmatprep.mubr.bf16.mxu0 0
        %1154 = vmatmul.mubr.bf16.gmra.mrb[0].mxu0 %v1069
        %v1155 = vpop.f32.mrb[0].mxu0
        %v1156 = vadd.f32 0.0, %v1155
        %v1157 = vpop.f32.mrb[0].mxu0
        %v1158 = vpop.f32.mrb[0].mxu0
        %v1159 = vpop.f32.mrb[0].mxu0
        %1160 = vdwg.mxu0
        %v1161 = vmul.f32 %v1115, %v688
        %v1162 = vmul.f32 %v1117, %v692
        %v1163 = vmul.f32 %v1156, %v696
        %v1164 = vadd.f32 %v1161, %v1162
        %v1165 = vadd.f32 %v1164, %v1163
        %1166 = vadd.xlane.f32.xlu0 %v1165
        %v1167 = vpop.xlane.xlu0 %1166
        %v1168 = vrot.slane %v1167, 4
        %v1169 = vadd.f32 %v1167, %v1168
        %v1170 = vrot.slane %v1169, 2
        %v1171 = vadd.f32 %v1169, %v1170
        %v1172 = vrot.slane %v1171, 1
        %v1173 = vadd.f32 %v1171, %v1172
        %s1174 = vtos %v1173
        %v1175 = vmul.f32 %v1115, %v1161
        %v1176 = vmul.f32 %v1117, %v1162
        %v1177 = vmul.f32 %v1156, %v1163
        %v1178 = vadd.f32 %v1175, %v1176
        %v1179 = vadd.f32 %v1178, %v1177
        %1180 = vadd.xlane.f32.xlu0 %v1179
        %v1181 = vpop.xlane.xlu0 %1180
        %v1182 = vrot.slane %v1181, 4
        %v1183 = vadd.f32 %v1181, %v1182
        %v1184 = vrot.slane %v1183, 2
        %v1185 = vadd.f32 %v1183, %v1184
        %v1186 = vrot.slane %v1185, 1
        %v1187 = vadd.f32 %v1185, %v1186
        %s1188 = vtos %v1187
        %v1189 = vrcp.pop 2048.0
        %s1190 = vtos %v1189
        %s1191 = smul.f32 %s1174, %s1190
        %v1192 = vrcp.pop 2048.0
        %s1193 = vtos %v1192
        %s1194 = smul.f32 %s1188, %s1193
        %s1195 = smul.f32 %s1191, %s1191
        %s1196 = ssub.f32 %s1194, %s1195
        %s1197 = smax.f32 %s1196, 0.0
        %s1198 = sadd.f32 %s1197, 1e-05
        %v1199 = vstv %s1198
        %v1200 = vrsqrt.pop %v1199
        %s1201 = vtos %v1200
        %v1202 = vstv %s1201
        %v1203 = vmul.f32 %v1202, %v252
        %v1204 = vstv %s1191
        %v1205 = vmul.f32 %v1204, %v1203
        %v1206 = vsub.f32 %v253, %v1205
        %1208 = vset.pattern.permute.xlu0 0
        %1209 = vperm.xlu0 %1208, %v1203
        %v1210 = vpop.permute.xlu0 %1209
        %v1212 = vmul.f32 %v1115, %v1210
        %v1213 = vmul.f32 %v1117, %v1210
        %v1214 = vmul.f32 %v1156, %v1210
        %1216 = vset.pattern.permute.xlu0 0
        %1217 = vperm.xlu0 %1216, %v1206
        %v1218 = vpop.permute.xlu0 %1217
        %v1220 = vadd.f32 %v1212, %v1218
        %v1221 = vadd.f32 %v1213, %v1218
        %v1222 = vadd.f32 %v1214, %v1218
        %v1223 = vmul.f32 %v1220, %v1220
        %v1224 = vmul.f32 %v1221, %v1221
        %v1225 = vmul.f32 %v1222, %v1222
        %v1226 = vmul.f32 %v1220, %v1223
        %v1227 = vmul.f32 %v1221, %v1224
        %v1228 = vmul.f32 %v1222, %v1225
        %v1229 = vmul.f32 %v1226, 0.044715
        %v1230 = vmul.f32 %v1227, 0.044715
        %v1231 = vmul.f32 %v1228, 0.044715
        %v1232 = vadd.f32 %v1220, %v1229
        %v1233 = vadd.f32 %v1221, %v1230
        %v1234 = vadd.f32 %v1222, %v1231
        %v1235 = vmul.f32 %v1232, 0.7978846
        %v1236 = vmul.f32 %v1233, 0.7978846
        %v1237 = vmul.f32 %v1234, 0.7978846
        %v1238 = vtanh.pop %v1235
        %v1239 = vtanh.pop %v1236
        %v1240 = vtanh.pop %v1237
        %v1241 = vadd.f32 %v1238, 1.0
        %v1242 = vadd.f32 %v1239, 1.0
        %v1243 = vadd.f32 %v1240, 1.0
        %v1244 = vmul.f32 %v1241, 0.5
        %v1245 = vmul.f32 %v1242, 0.5
        %v1246 = vmul.f32 %v1243, 0.5
        %v1247 = vmul.f32 %v1220, %v1244
        %v1248 = vmul.f32 %v1221, %v1245
        %v1249 = vmul.f32 %v1222, %v1246
        %1250 = vst [vmem:[%s244] sm:$0xff] %v1247
        %1251 = vst [vmem:[%s244 + $0x8] sm:$0xff] %v1248
        %1252 = vst [vmem:[%s244 + $0x10] sm:$0xff] %v1249
        %s1253 = sand.u32 %s159, 1
        %s1254 = scalar_lea.sflag [#allocation5], %s1253
        %s1255 = sand.u32 %s159, 1
        %s1256 = smul.addr %s1255, 24
        %s1257 = scalar_lea.vmem [#allocation4], %s1256
        // Predicated region
        $region45: #{tpu_custom_call.1} parent=43 // pred_check
          %p1258 = pneg %p169
        $region46: #{tpu_custom_call.1} parent=43 // pred_check_branch
          %1260 = sbr.rel (%p1258) target = $region48
        $region47: #{tpu_custom_call.1} parent=43 // pred_region
          %s1262 = ssub.s32 384, 384
          %1263 = vsyncadd %s1254, %s1262
          %s1264 = smul.addr %s20, 3
          %s1265 = smul.addr %s1264, 128
          %s1266 = scalar_lea.hbm %s6, %s1265
          %s1268 = sshll.u32 %s1257, 4
          %s1269 = int_to_ptr.vmem [resolvable:$true] %s1268
          %1271 = dma.vmem_to_hbm [thread:$0]  %s1269, 384, %s1266, %s1254
        $region48: #{tpu_custom_call.1} parent=43 // pred_fallthru
          _
      $region44: #{tpu_custom_call.1} parent=5 // pred_fallthru
        _
      %p1272 = scmp.le.s32.totalorder 2, %s15
      // Predicated region
      $region49: #{tpu_custom_call.1} parent=5 // pred_check
        %p1273 = pneg %p1272
      $region50: #{tpu_custom_call.1} parent=5 // pred_check_branch
        %1275 = sbr.rel (%p1273) target = $region52
      $region51: #{tpu_custom_call.1} parent=5 // pred_region
        %s1276 = ssub.s32 %s15, 2
        // Predicated region
        $region53: #{tpu_custom_call.1} parent=51 // pred_check
          %p1277 = pneg %p175
        $region54: #{tpu_custom_call.1} parent=51 // pred_check_branch
          %1279 = sbr.rel (%p1277) target = $region56
        $region55: #{tpu_custom_call.1} parent=51 // pred_region
          %s1280 = sand.u32 %s160, 1
          %s1281 = scalar_lea.sflag [#allocation5], %s1280
          %s1282 = sand.u32 %s160, 1
          %s1283 = smul.addr %s1282, 24
          %s1284 = scalar_lea.vmem [#allocation4], %s1283
          %1285 = dma.done %s1281, 384
        $region56: #{tpu_custom_call.1} parent=51 // pred_fallthru
          _
      $region52: #{tpu_custom_call.1} parent=5 // pred_fallthru
        _
    $region6: #{tpu_custom_call.1} parent=1 // loop_footer
      %s19 = sadd.s32 1, %s15
    $region7: #{tpu_custom_call.1} parent=1 // loop_footer_branch
      %14 = sbr.rel target = $region3
    $region8: #{tpu_custom_call.1} parent=1 // loop_exit
      _
    %1286 = vsyncpa [#allocation5], 1
    %s1287 = scalar_lea.sflag [#allocation5], 1
    %1288 = vsyncpa %s1287, 1

</llo_original>
